<compile_context>
chip_gen: v7x
topology: tpu7x:2x2x1
jax: 0.10.0
libtpu: 0.0.40
codegen_flags: <defaults>
</compile_context>

<pallas_src>
import functools

import jax
import jax.numpy as jnp
from jax import lax
from jax.experimental import pallas as pl
from jax.experimental.pallas import tpu as pltpu


# -----------------------------------------------------------------------------
# small helpers
# -----------------------------------------------------------------------------
def _round_up(x, m):
    return (x + m - 1) // m * m


def _tpu_generation():
    try:
        kind = jax.devices()[0].device_kind.lower()
    except Exception:
        return "unknown"
    if "v5" in kind:
        return "v5"
    if "v6" in kind:
        return "v6"
    if "v7" in kind or "tpu7" in kind:
        return "v7"
    return "unknown"


# (vmem_limit_bytes, budget used by the b_tile footprint model)
_VMEM_CFG = {
    "v5": (64 * 2**20, 48 * 2**20),       # 128 MiB physical, low HBM BW -> big tiles
    "v6": (96 * 2**20, 80 * 2**20),       # 128 MiB physical
    "v7": (48 * 2**20, 40 * 2**20),       # 64 MiB/TC physical -> leave headroom
    "unknown": (48 * 2**20, 36 * 2**20),  # safe on every generation
}
_MIN_GRID = {"v5": 2, "v6": 2, "v7": 4, "unknown": 2}


def _seg_row_pos(b, seg):
    """Row index within each length-`seg` segment, shape (b*seg, 1)."""
    return lax.broadcasted_iota(jnp.int32, (b, seg, 1), 1).reshape(b * seg, 1)


def _shift_down(v, pos):
    """row r <- v[r-1]; zero on the first row of each segment (pos == 0)."""
    keep = (pos != 0).astype(v.dtype)                    # (M, 1) lane-broadcast
    return pltpu.roll(v, 1, axis=0) * keep


def _shift_up(v, pos, last):
    """row r <- v[r+1]; zero on the last row of each segment (pos == last)."""
    keep = (pos != last).astype(v.dtype)
    return pltpu.roll(v, v.shape[0] - 1, axis=0) * keep


# -----------------------------------------------------------------------------
# Pallas kernel: one grid step = b_tile batch elements, fully fused in VMEM.
# All activations live as flat (b_tile*length, C_padded) matrices.
# -----------------------------------------------------------------------------
def _preact_block_kernel(*refs, b_tile, l_out, stride, downsample, fuse_taps):
    if downsample:
        (x_ref, bn1s_ref, bn1b_ref, w1_ref, bn2s_ref, bn2b_ref, w2_ref,
         f1w_ref, f1b_ref, f2w_ref, f2b_ref,
         scw_ref, scbns_ref, scbnb_ref, o_ref) = refs
    else:
        (x_ref, bn1s_ref, bn1b_ref, w1_ref, bn2s_ref, bn2b_ref, w2_ref,
         f1w_ref, f1b_ref, f2w_ref, f2b_ref, o_ref) = refs

    cpo = o_ref.shape[-1]
    bn1s = bn1s_ref[...]
    bn1b = bn1b_ref[...]
    pos = _seg_row_pos(b_tile, l_out)                            # (M, 1)

    def conv3(t_m1, t_0, t_p1, w_ref):
        k = w_ref.shape[0] // 3
        if fuse_taps:
            # K = 3*C single matmul (fills the 256-deep MXU on v6e/v7x)
            im2col = jnp.concatenate(
                [t_m1.astype(jnp.bfloat16), t_0.astype(jnp.bfloat16),
                 t_p1.astype(jnp.bfloat16)], axis=-1)            # (M, 3C)
            return jnp.dot(im2col, w_ref[...],
                           preferred_element_type=jnp.float32)
        # v5-class: three accumulating K=C matmuls (128-deep MXU already full),
        # avoids materializing the (M, 3C) concat copy through the store slot.
        return (jnp.dot(t_m1.astype(jnp.bfloat16), w_ref[:k, :],
                        preferred_element_type=jnp.float32)
                + jnp.dot(t_0.astype(jnp.bfloat16), w_ref[k:2 * k, :],
                          preferred_element_type=jnp.float32)
                + jnp.dot(t_p1.astype(jnp.bfloat16), w_ref[2 * k:, :],
                          preferred_element_type=jnp.float32))

    # ---- BN1 (eval, folded) + ReLU and the three conv1 taps -----------------
    if stride == 1:
        x = x_ref[...].astype(jnp.float32)                       # (M, Cpi)
        a = jnp.maximum(x * bn1s + bn1b, 0.0)
        t_0 = a
        t_m1 = _shift_down(a, pos)                               # a[l-1]
        t_p1 = _shift_up(a, pos, l_out - 1)                      # a[l+1]
    else:
        # stride == 2: x_ref is (b_tile*Lo, 2*Cpi); row r = [x[2r] | x[2r+1]]
        cpi = x_ref.shape[-1] // 2
        x_even = x_ref[:, :cpi].astype(jnp.float32)
        x_odd = x_ref[:, cpi:].astype(jnp.float32)
        t_0 = jnp.maximum(x_even * bn1s + bn1b, 0.0)             # a[2r]
        t_p1 = jnp.maximum(x_odd * bn1s + bn1b, 0.0)             # a[2r+1]
        t_m1 = _shift_down(t_p1, pos)                            # a[2r-1]

    # ---- conv1 (bf16 operands, f32 accumulation) -----------------------------
    y = conv3(t_m1, t_0, t_p1, w1_ref)                           # (M, Cpo)

    # ---- BN2 + ReLU + conv2 (k=3, s=1, pad=1) --------------------------------
    b = jnp.maximum(y * bn2s_ref[...] + bn2b_ref[...], 0.0)
    b_m1 = _shift_down(b, pos)
    b_p1 = _shift_up(b, pos, l_out - 1)
    out = conv3(b_m1, b, b_p1, w2_ref)                           # (M, Cpo)

    # ---- squeeze-excitation (tiny; exact sigmoid) ----------------------------
    out3 = out.reshape(b_tile, l_out, cpo)
    wv = jnp.mean(out3, axis=1)                                  # (b_tile, Cpo)
    h = jnp.maximum(
        jnp.dot(wv, f1w_ref[...], preferred_element_type=jnp.float32)
        + f1b_ref[...], 0.0)                                     # (b_tile, Cmid)
    z = jnp.dot(h, f2w_ref[...],
                preferred_element_type=jnp.float32) + f2b_ref[...]
    gate = 1.0 / (1.0 + jnp.exp(-z))                             # exact sigmoid
    gate3 = lax.broadcast_in_dim(gate, (b_tile, l_out, cpo), (0, 2))

    # ---- shortcut -------------------------------------------------------------
    if downsample:
        # MaxPool1d(k=3,s=2,p=1) on post-ReLU activations (zero pad == -inf pad)
        mp = jnp.maximum(jnp.maximum(t_m1, t_0), t_p1)           # (M, Cpi)
        sc = jnp.dot(mp.astype(jnp.bfloat16), scw_ref[...],
                     preferred_element_type=jnp.float32)         # (M, Cpo)
        sc = sc * scbns_ref[...] + scbnb_ref[...]
        sc3 = sc.reshape(b_tile, l_out, cpo)
    else:
        sc3 = x.reshape(b_tile, l_out, cpo)                      # identity: raw x

    o_ref[...] = (out3 * gate3 + sc3).astype(o_ref.dtype)


# -----------------------------------------------------------------------------
# b_tile selection from an explicit VMEM footprint model.
# -----------------------------------------------------------------------------
def _choose_b_tile(n, l_out, stride_factor, cpi, cpo, cmid, downsample,
                   budget, min_grid):
    in_row = stride_factor * cpi * 2          # bf16 input bytes per output row
    out_row = cpo * 2                         # bf16 output bytes per output row
    io_row = 2 * (in_row + out_row)           # double-buffered pipeline blocks
    tmp_row = 20 * cpi + 36 * cpo             # live f32/bf16 intermediates (conservative)
    per_row = io_row + tmp_row
    # constants are still double-buffered by the default pipeline (see TODO below)
    weights = 2 * (2 * 3 * cpi * cpo                      # w1 (bf16)
                   + 2 * 3 * cpo * cpo                    # w2 (bf16)
                   + (2 * cpi * cpo if downsample else 0)  # shortcut 1x1 (bf16)
                   + 8 * cpi + 24 * cpo + 8 * cmid * cpo + 8 * cmid)
    rows_budget = max(l_out, (budget - weights) // per_row)
    # M ~ 512-1024 already fills the MXU pipeline; larger only burns VMEM.
    target_rows = max(l_out, min(1024, rows_budget))
    b_tile = max(1, int(target_rows) // l_out)
    b_tile = min(b_tile, -(-n // min_grid))   # keep at least min_grid steps
    return b_tile


# -----------------------------------------------------------------------------
# Wrapper (channels-last / NLC): channel padding, weight stacking, BlockSpecs.
# -----------------------------------------------------------------------------
def _const_spec(shape):
    nd = len(shape)
    # TODO(synk): single-buffer these never-changing operands with
    # pl.BlockSpec(..., pipeline_mode=pl.Buffered(1)) once available on the
    # deployed jax; the footprint model above conservatively counts them twice.
    return pl.BlockSpec(shape, lambda n, _nd=nd: (0,) * _nd)


def preact_block_forward_nlc(x_nlc, params, *, stride, in_planes, planes,
                             b_tile=None, out_dtype=jnp.bfloat16):
    """x_nlc: (N, L, in_planes) -> (N, Lo, planes), channels-last, bf16 I/O."""
    N, L, C = x_nlc.shape
    assert C == in_planes
    assert planes >= 16, "SE branch requires planes >= 16 (planes // 16 >= 1)"
    downsample = (stride != 1) or (in_planes != planes)
    if downsample:
        assert stride == 2, "downsampling shortcut requires stride == 2"
        assert L % 16 == 0, "stride-2 path requires L % 16 == 0"
    else:
        assert L % 8 == 0, "L must be a multiple of 8"
    l_out = L // 2 if stride == 2 else L
    stride_factor = L // l_out

    cpi = _round_up(in_planes, 128)     # lane-dense padded channel widths
    cpo = _round_up(planes, 128)
    cmid = planes // 16

    gen = _tpu_generation()
    vmem_limit, vmem_budget = _VMEM_CFG[gen]
    min_grid = _MIN_GRID[gen]
    fuse_taps = gen != "v5"             # v5-class MXU is 128-deep: K=C per tap is enough

    if b_tile is None:
        b_tile = _choose_b_tile(N, l_out, stride_factor, cpi, cpo, cmid,
                                downsample, vmem_budget, min_grid)
    # Pad the batch so it tiles evenly; keep the grid even (>= 4) on v7x so
    # both TensorCores get balanced work with some pipeline depth.
    n_pad = _round_up(N, b_tile)
    if gen == "v7" and (n_pad // b_tile) > 1 and (n_pad // b_tile) % 2 == 1:
        n_pad += b_tile
    grid = n_pad // b_tile

    # ---- parameter prep (padded, BN folded to eval-mode scale/shift) ---------
    def pad_to(v, width):
        return jnp.pad(v, (0, width - v.shape[0]))

    def fold_bn(gamma, beta, mean, var, width, eps=1e-5):
        s = gamma / jnp.sqrt(var + eps)
        return (pad_to(s, width).reshape(1, width).astype(jnp.float32),
                pad_to(beta - mean * s, width).reshape(1, width).astype(jnp.float32))

    def stack_conv3(w, ci_p, co_p):
        # torch layout (Cout, Cin, 3) -> (3*ci_p, co_p), tap order [-1, 0, +1]
        wt = jnp.transpose(w, (2, 1, 0))                             # (3, Cin, Cout)
        wt = jnp.pad(wt, ((0, 0), (0, ci_p - wt.shape[1]), (0, co_p - wt.shape[2])))
        return wt.reshape(3 * ci_p, co_p).astype(jnp.bfloat16)

    bn1s, bn1b = fold_bn(*params["bn1"], cpi)
    bn2s, bn2b = fold_bn(*params["bn2"], cpo)
    w1s = stack_conv3(params["conv1_w"], cpi, cpo)
    w2s = stack_conv3(params["conv2_w"], cpo, cpo)
    f1w = jnp.pad(params["fc1_w"][:, :, 0].T,
                  ((0, cpo - planes), (0, 0))).astype(jnp.float32)   # (cpo, cmid)
    f1b = params["fc1_b"].reshape(1, cmid).astype(jnp.float32)
    f2w = jnp.pad(params["fc2_w"][:, :, 0].T,
                  ((0, 0), (0, cpo - planes))).astype(jnp.float32)   # (cmid, cpo)
    f2b = jnp.pad(params["fc2_b"], (0, cpo - planes)).reshape(1, cpo).astype(jnp.float32)

    # ---- input packing: bf16 through HBM, lane-padded, flat ------------------
    xp = jnp.pad(x_nlc.astype(jnp.bfloat16),
                 ((0, n_pad - N), (0, 0), (0, cpi - in_planes)))     # (n_pad, L, cpi)
    if stride == 1:
        x_in = xp.reshape(n_pad * L, cpi)
        x_block = (b_tile * L, cpi)
    else:
        # row r holds [x[2r] | x[2r+1]]  (pure view: channels are contiguous)
        x_in = xp.reshape(n_pad * l_out, 2 * cpi)
        x_block = (b_tile * l_out, 2 * cpi)

    args = [x_in, bn1s, bn1b, w1s, bn2s, bn2b, w2s, f1w, f1b, f2w, f2b]
    in_specs = [pl.BlockSpec(x_block, lambda n: (n, 0))]
    in_specs += [_const_spec(a.shape) for a in args[1:]]

    if downsample:
        scw = jnp.pad(params["sc_conv_w"][:, :, 0].T,
                      ((0, cpi - in_planes), (0, cpo - planes))).astype(jnp.bfloat16)
        scbns, scbnb = fold_bn(*params["sc_bn"], cpo)
        args += [scw, scbns, scbnb]
        in_specs += [_const_spec(scw.shape), _const_spec(scbns.shape),
                     _const_spec(scbnb.shape)]

    kern = functools.partial(_preact_block_kernel, b_tile=b_tile, l_out=l_out,
                             stride=stride, downsample=downsample,
                             fuse_taps=fuse_taps)

    out_p = pl.pallas_call(
        kern,
        out_shape=jax.ShapeDtypeStruct((n_pad, l_out, cpo), out_dtype),
        grid_spec=pltpu.PrefetchScalarGridSpec(
            num_scalar_prefetch=0,
            grid=(grid,),
            in_specs=in_specs,
            out_specs=pl.BlockSpec((b_tile, l_out, cpo), lambda n: (n, 0, 0)),
        ),
        compiler_params=pltpu.CompilerParams(
            dimension_semantics=("parallel",),
            vmem_limit_bytes=vmem_limit,
        ),
    )(*args)

    # TODO(synk): for very long L (thousands), tile L inside the block (second
    # grid axis with a 1-row halo) so activation VMEM stops scaling with
    # b_tile * L; the current footprint model falls back to b_tile=1 instead.
    return out_p[:N, :, :planes]


def preact_block_forward(x_ncl, params, *, stride, in_planes, planes,
                         b_tile=None, out_dtype=jnp.bfloat16):
    """PyTorch-layout (N, C, L) entry point.

    TODO(synk): in a chained ResNet keep activations bf16 NLC end-to-end and
    call preact_block_forward_nlc directly to avoid per-block transposes/casts.
    """
    x_nlc = jnp.transpose(x_ncl, (0, 2, 1))
    out = preact_block_forward_nlc(x_nlc, params, stride=stride,
                                   in_planes=in_planes, planes=planes,
                                   b_tile=b_tile, out_dtype=out_dtype)
    return jnp.transpose(out, (0, 2, 1))


# -----------------------------------------------------------------------------
# Pure-JAX reference (NCL layout, mirrors the PyTorch forward) for validation.
# -----------------------------------------------------------------------------
def reference_forward(x, p, *, stride, in_planes, planes):
    eps = 1e-5

    def bn(t, gamma, beta, mean, var):
        g = gamma.reshape(1, -1, 1); b = beta.reshape(1, -1, 1)
        m = mean.reshape(1, -1, 1); v = var.reshape(1, -1, 1)
        return (t - m) / jnp.sqrt(v + eps) * g + b

    def conv1d(t, w, stride=1, pad=1):
        return lax.conv_general_dilated(
            t, w, (stride,), [(pad, pad)],
            dimension_numbers=("NCH", "OIH", "NCH"),
            precision=lax.Precision.HIGHEST)

    out = jax.nn.relu(bn(x, *p["bn1"]))
    downsample = (stride != 1) or (in_planes != planes)
    if downsample:
        sc = lax.reduce_window(out, -jnp.inf, lax.max,
                               (1, 1, 3), (1, 1, 2),
                               [(0, 0), (0, 0), (1, 1)])
        sc = conv1d(sc, p["sc_conv_w"], stride=1, pad=0)
        sc = bn(sc, *p["sc_bn"])
    else:
        sc = x
    out = conv1d(out, p["conv1_w"], stride=stride, pad=1)
    out = conv1d(jax.nn.relu(bn(out, *p["bn2"])), p["conv2_w"], stride=1, pad=1)
    w = jnp.mean(out, axis=2, keepdims=True)
    w = jax.nn.relu(conv1d(w, p["fc1_w"], pad=0) + p["fc1_b"].reshape(1, -1, 1))
    w = jax.nn.sigmoid(conv1d(w, p["fc2_w"], pad=0) + p["fc2_b"].reshape(1, -1, 1))
    return out * w + sc


# -----------------------------------------------------------------------------
# Deterministic parameter init (PyTorch weight layouts).
# -----------------------------------------------------------------------------
def init_params(key, in_planes, planes, downsample):
    ks = jax.random.split(key, 20)
    rnd = lambda k, shape, s=0.2: s * jax.random.normal(k, shape, jnp.float32)
    posv = lambda k, n: 1.0 + 0.1 * jnp.abs(jax.random.normal(k, (n,), jnp.float32))
    cmid = planes // 16
    p = {
        "bn1": (1.0 + rnd(ks[0], (in_planes,), 0.1), rnd(ks[1], (in_planes,), 0.1),
                rnd(ks[2], (in_planes,), 0.1), posv(ks[3], in_planes)),
        "conv1_w": rnd(ks[4], (planes, in_planes, 3)),
        "bn2": (1.0 + rnd(ks[5], (planes,), 0.1), rnd(ks[6], (planes,), 0.1),
                rnd(ks[7], (planes,), 0.1), posv(ks[8], planes)),
        "conv2_w": rnd(ks[9], (planes, planes, 3)),
        "fc1_w": rnd(ks[10], (cmid, planes, 1)),
        "fc1_b": rnd(ks[11], (cmid,), 0.1),
        "fc2_w": rnd(ks[12], (planes, cmid, 1)),
        "fc2_b": rnd(ks[13], (planes,), 0.1),
    }
    if downsample:
        p["sc_conv_w"] = rnd(ks[14], (planes, in_planes, 1))
        p["sc_bn"] = (1.0 + rnd(ks[15], (planes,), 0.1), rnd(ks[16], (planes,), 0.1),
                      rnd(ks[17], (planes,), 0.1), posv(ks[18], planes))
    return p


if __name__ == "__main__":
    key = jax.random.PRNGKey(0)
    kpA, kpB, kxA, kxB = jax.random.split(key, 4)

    N, L = 4, 16

    def check(out, ref, name):
        err = jnp.abs(out.astype(jnp.float32) - ref)
        # bf16 HBM I/O + bf16 matmul operands vs f32-HIGHEST reference
        tol = 4e-2 + 2.5e-2 * jnp.abs(ref)
        assert bool(jnp.all(err <= tol)), (
            f"{name}: max abs err {float(jnp.max(err))}")

    # --- Config A: identity shortcut (stride=1, in_planes == planes) ---------
    in_pA = planesA = 32
    pA = init_params(kpA, in_pA, planesA, downsample=False)
    xA = jax.random.normal(kxA, (N, in_pA, L), jnp.float32)
    outA = jax.block_until_ready(
        preact_block_forward(xA, pA, stride=1, in_planes=in_pA, planes=planesA))
    refA = reference_forward(xA, pA, stride=1, in_planes=in_pA, planes=planesA)
    assert outA.shape == (N, planesA, L)
    check(outA, refA, "config A")

    # --- Config B: downsampling shortcut (stride=2, in_planes != planes) -----
    in_pB, planesB = 16, 32
    pB = init_params(kpB, in_pB, planesB, downsample=True)
    xB = jax.random.normal(kxB, (N, in_pB, L), jnp.float32)
    outB = jax.block_until_ready(
        preact_block_forward(xB, pB, stride=2, in_planes=in_pB, planes=planesB))
    refB = reference_forward(xB, pB, stride=2, in_planes=in_pB, planes=planesB)
    assert outB.shape == (N, planesB, L // 2)
    check(outB, refB, "config B")

    print("KERNEL_OK")
</pallas_src>

<mosaic_0001>
module attributes {stable_mosaic.version = 11 : i64} {
  func.func @_preact_block_kernel(%arg0: i32, %arg1: memref<32x128xbf16, #tpu.memory_space<vmem>>, %arg2: memref<1x128xf32, #tpu.memory_space<vmem>>, %arg3: memref<1x128xf32, #tpu.memory_space<vmem>>, %arg4: memref<384x128xbf16, #tpu.memory_space<vmem>>, %arg5: memref<1x128xf32, #tpu.memory_space<vmem>>, %arg6: memref<1x128xf32, #tpu.memory_space<vmem>>, %arg7: memref<384x128xbf16, #tpu.memory_space<vmem>>, %arg8: memref<128x2xf32, #tpu.memory_space<vmem>>, %arg9: memref<1x2xf32, #tpu.memory_space<vmem>>, %arg10: memref<2x128xf32, #tpu.memory_space<vmem>>, %arg11: memref<1x128xf32, #tpu.memory_space<vmem>>, %arg12: memref<2x16x128xbf16, #tpu.memory_space<vmem>>) attributes {dimension_semantics = [#tpu.dimension_semantics<parallel>], iteration_bounds = array<i64: 2>, scalar_prefetch = 0 : i64, scratch_operands = 0 : i64, tpu.core_type = #tpu.core_type<tc>, window_params = [{transform_indices = @transform_0, window_bounds = array<i64: 32, 128>}, {pipeline_mode = #tpu.pipeline_mode<synchronous>, transform_indices = @transform_1, window_bounds = array<i64: 1, 128>}, {pipeline_mode = #tpu.pipeline_mode<synchronous>, transform_indices = @transform_2, window_bounds = array<i64: 1, 128>}, {pipeline_mode = #tpu.pipeline_mode<synchronous>, transform_indices = @transform_3, window_bounds = array<i64: 384, 128>}, {pipeline_mode = #tpu.pipeline_mode<synchronous>, transform_indices = @transform_4, window_bounds = array<i64: 1, 128>}, {pipeline_mode = #tpu.pipeline_mode<synchronous>, transform_indices = @transform_5, window_bounds = array<i64: 1, 128>}, {pipeline_mode = #tpu.pipeline_mode<synchronous>, transform_indices = @transform_6, window_bounds = array<i64: 384, 128>}, {pipeline_mode = #tpu.pipeline_mode<synchronous>, transform_indices = @transform_7, window_bounds = array<i64: 128, 2>}, {pipeline_mode = #tpu.pipeline_mode<synchronous>, transform_indices = @transform_8, window_bounds = array<i64: 1, 2>}, {pipeline_mode = #tpu.pipeline_mode<synchronous>, transform_indices = @transform_9, window_bounds = array<i64: 2, 128>}, {pipeline_mode = #tpu.pipeline_mode<synchronous>, transform_indices = @transform_10, window_bounds = array<i64: 1, 128>}, {transform_indices = @transform_11, window_bounds = array<i64: 2, 16, 128>}]} {
    %c0 = arith.constant 0 : index
    %c0_0 = arith.constant 0 : index
    %0 = vector.load %arg2[%c0, %c0_0] : memref<1x128xf32, #tpu.memory_space<vmem>>, vector<1x128xf32>
    %c0_1 = arith.constant 0 : index
    %c0_2 = arith.constant 0 : index
    %1 = vector.load %arg3[%c0_1, %c0_2] : memref<1x128xf32, #tpu.memory_space<vmem>>, vector<1x128xf32>
    %2 = tpu.iota {dimensions = array<i32: 1>} : vector<2x16x1xi32>
    %3 = vector.shape_cast %2 : vector<2x16x1xi32> to vector<32x1xi32>
    %c0_3 = arith.constant 0 : index
    %c0_4 = arith.constant 0 : index
    %4 = vector.load %arg1[%c0_3, %c0_4] : memref<32x128xbf16, #tpu.memory_space<vmem>>, vector<32x128xbf16>
    %5 = arith.extf %4 : vector<32x128xbf16> to vector<32x128xf32>
    %6 = vector.broadcast %0 : vector<1x128xf32> to vector<32x128xf32>
    %7 = arith.mulf %5, %6 : vector<32x128xf32>
    %8 = vector.broadcast %1 : vector<1x128xf32> to vector<32x128xf32>
    %9 = arith.addf %7, %8 : vector<32x128xf32>
    %cst = arith.constant 0.000000e+00 : f32
    %10 = vector.broadcast %cst : f32 to vector<32x128xf32>
    %11 = arith.maximumf %9, %10 : vector<32x128xf32>
    %c0_i32 = arith.constant 0 : i32
    %12 = vector.broadcast %c0_i32 : i32 to vector<32x1xi32>
    %13 = arith.cmpi ne, %3, %12 : vector<32x1xi32>
    %14 = arith.extui %13 : vector<32x1xi1> to vector<32x1xi32>
    %15 = arith.sitofp %14 : vector<32x1xi32> to vector<32x1xf32>
    %c1_i32 = arith.constant 1 : i32
    %16 = tpu.dynamic_rotate %11 by %c1_i32 dim 0 : vector<32x128xf32>, i32 -> vector<32x128xf32>
    %17 = vector.broadcast %15 : vector<32x1xf32> to vector<32x128xf32>
    %18 = arith.mulf %16, %17 : vector<32x128xf32>
    %c15_i32 = arith.constant 15 : i32
    %19 = vector.broadcast %c15_i32 : i32 to vector<32x1xi32>
    %20 = arith.cmpi ne, %3, %19 : vector<32x1xi32>
    %21 = arith.extui %20 : vector<32x1xi1> to vector<32x1xi32>
    %22 = arith.sitofp %21 : vector<32x1xi32> to vector<32x1xf32>
    %c31_i32 = arith.constant 31 : i32
    %23 = tpu.dynamic_rotate %11 by %c31_i32 dim 0 : vector<32x128xf32>, i32 -> vector<32x128xf32>
    %24 = vector.broadcast %22 : vector<32x1xf32> to vector<32x128xf32>
    %25 = arith.mulf %23, %24 : vector<32x128xf32>
    %26 = arith.truncf %18 : vector<32x128xf32> to vector<32x128xbf16>
    %27 = arith.truncf %11 : vector<32x128xf32> to vector<32x128xbf16>
    %28 = arith.truncf %25 : vector<32x128xf32> to vector<32x128xbf16>
    %29 = tpu.concatenate %26, %27, %28 in 1 : vector<32x128xbf16>, vector<32x128xbf16>, vector<32x128xbf16> -> vector<32x384xbf16>
    %c0_5 = arith.constant 0 : index
    %c0_6 = arith.constant 0 : index
    %30 = vector.load %arg4[%c0_5, %c0_6] : memref<384x128xbf16, #tpu.memory_space<vmem>>, vector<384x128xbf16>
    %cst_7 = arith.constant dense<0.000000e+00> : vector<32x128xf32>
    %31 = tpu.matmul %29, %30, %cst_7 {dimension_numbers = #tpu.dot_dimension_numbers<[1], [0], [0], [1], [0, 0, 1, 1], [], []>} : vector<32x384xbf16>, vector<384x128xbf16>, vector<32x128xf32> -> vector<32x128xf32>
    %c0_8 = arith.constant 0 : index
    %c0_9 = arith.constant 0 : index
    %32 = vector.load %arg5[%c0_8, %c0_9] : memref<1x128xf32, #tpu.memory_space<vmem>>, vector<1x128xf32>
    %33 = vector.broadcast %32 : vector<1x128xf32> to vector<32x128xf32>
    %34 = arith.mulf %31, %33 : vector<32x128xf32>
    %c0_10 = arith.constant 0 : index
    %c0_11 = arith.constant 0 : index
    %35 = vector.load %arg6[%c0_10, %c0_11] : memref<1x128xf32, #tpu.memory_space<vmem>>, vector<1x128xf32>
    %36 = vector.broadcast %35 : vector<1x128xf32> to vector<32x128xf32>
    %37 = arith.addf %34, %36 : vector<32x128xf32>
    %cst_12 = arith.constant 0.000000e+00 : f32
    %38 = vector.broadcast %cst_12 : f32 to vector<32x128xf32>
    %39 = arith.maximumf %37, %38 : vector<32x128xf32>
    %c0_i32_13 = arith.constant 0 : i32
    %40 = vector.broadcast %c0_i32_13 : i32 to vector<32x1xi32>
    %41 = arith.cmpi ne, %3, %40 : vector<32x1xi32>
    %42 = arith.extui %41 : vector<32x1xi1> to vector<32x1xi32>
    %43 = arith.sitofp %42 : vector<32x1xi32> to vector<32x1xf32>
    %c1_i32_14 = arith.constant 1 : i32
    %44 = tpu.dynamic_rotate %39 by %c1_i32_14 dim 0 : vector<32x128xf32>, i32 -> vector<32x128xf32>
    %45 = vector.broadcast %43 : vector<32x1xf32> to vector<32x128xf32>
    %46 = arith.mulf %44, %45 : vector<32x128xf32>
    %c15_i32_15 = arith.constant 15 : i32
    %47 = vector.broadcast %c15_i32_15 : i32 to vector<32x1xi32>
    %48 = arith.cmpi ne, %3, %47 : vector<32x1xi32>
    %49 = arith.extui %48 : vector<32x1xi1> to vector<32x1xi32>
    %50 = arith.sitofp %49 : vector<32x1xi32> to vector<32x1xf32>
    %c31_i32_16 = arith.constant 31 : i32
    %51 = tpu.dynamic_rotate %39 by %c31_i32_16 dim 0 : vector<32x128xf32>, i32 -> vector<32x128xf32>
    %52 = vector.broadcast %50 : vector<32x1xf32> to vector<32x128xf32>
    %53 = arith.mulf %51, %52 : vector<32x128xf32>
    %54 = arith.truncf %46 : vector<32x128xf32> to vector<32x128xbf16>
    %55 = arith.truncf %39 : vector<32x128xf32> to vector<32x128xbf16>
    %56 = arith.truncf %53 : vector<32x128xf32> to vector<32x128xbf16>
    %57 = tpu.concatenate %54, %55, %56 in 1 : vector<32x128xbf16>, vector<32x128xbf16>, vector<32x128xbf16> -> vector<32x384xbf16>
    %c0_17 = arith.constant 0 : index
    %c0_18 = arith.constant 0 : index
    %58 = vector.load %arg7[%c0_17, %c0_18] : memref<384x128xbf16, #tpu.memory_space<vmem>>, vector<384x128xbf16>
    %cst_19 = arith.constant dense<0.000000e+00> : vector<32x128xf32>
    %59 = tpu.matmul %57, %58, %cst_19 {dimension_numbers = #tpu.dot_dimension_numbers<[1], [0], [0], [1], [0, 0, 1, 1], [], []>} : vector<32x384xbf16>, vector<384x128xbf16>, vector<32x128xf32> -> vector<32x128xf32>
    %60 = vector.shape_cast %59 : vector<32x128xf32> to vector<2x16x128xf32>
    %cst_20 = arith.constant dense<0.000000e+00> : vector<2x128xf32>
    %61 = vector.multi_reduction <add>, %60, %cst_20 [1] : vector<2x16x128xf32> to vector<2x128xf32>
    %cst_21 = arith.constant 1.600000e+01 : f32
    %62 = vector.broadcast %cst_21 : f32 to vector<2x128xf32>
    %63 = arith.divf %61, %62 : vector<2x128xf32>
    %c0_22 = arith.constant 0 : index
    %c0_23 = arith.constant 0 : index
    %64 = vector.load %arg8[%c0_22, %c0_23] : memref<128x2xf32, #tpu.memory_space<vmem>>, vector<128x2xf32>
    %cst_24 = arith.constant dense<0.000000e+00> : vector<2x2xf32>
    %65 = tpu.matmul %63, %64, %cst_24 {dimension_numbers = #tpu.dot_dimension_numbers<[1], [0], [0], [1], [0, 0, 1, 1], [], []>} : vector<2x128xf32>, vector<128x2xf32>, vector<2x2xf32> -> vector<2x2xf32>
    %c0_25 = arith.constant 0 : index
    %c0_26 = arith.constant 0 : index
    %66 = vector.load %arg9[%c0_25, %c0_26] : memref<1x2xf32, #tpu.memory_space<vmem>>, vector<1x2xf32>
    %67 = vector.broadcast %66 : vector<1x2xf32> to vector<2x2xf32>
    %68 = arith.addf %65, %67 : vector<2x2xf32>
    %cst_27 = arith.constant 0.000000e+00 : f32
    %69 = vector.broadcast %cst_27 : f32 to vector<2x2xf32>
    %70 = arith.maximumf %68, %69 : vector<2x2xf32>
    %c0_28 = arith.constant 0 : index
    %c0_29 = arith.constant 0 : index
    %71 = vector.load %arg10[%c0_28, %c0_29] : memref<2x128xf32, #tpu.memory_space<vmem>>, vector<2x128xf32>
    %cst_30 = arith.constant dense<0.000000e+00> : vector<2x128xf32>
    %72 = tpu.matmul %70, %71, %cst_30 {dimension_numbers = #tpu.dot_dimension_numbers<[1], [0], [0], [1], [0, 0, 1, 1], [], []>} : vector<2x2xf32>, vector<2x128xf32>, vector<2x128xf32> -> vector<2x128xf32>
    %c0_31 = arith.constant 0 : index
    %c0_32 = arith.constant 0 : index
    %73 = vector.load %arg11[%c0_31, %c0_32] : memref<1x128xf32, #tpu.memory_space<vmem>>, vector<1x128xf32>
    %74 = vector.broadcast %73 : vector<1x128xf32> to vector<2x128xf32>
    %75 = arith.addf %72, %74 : vector<2x128xf32>
    %cst_33 = arith.constant 0.000000e+00 : f32
    %76 = vector.broadcast %cst_33 : f32 to vector<2x128xf32>
    %77 = arith.subf %76, %75 : vector<2x128xf32>
    %78 = math.exp %77 : vector<2x128xf32>
    %cst_34 = arith.constant 1.000000e+00 : f32
    %79 = vector.broadcast %cst_34 : f32 to vector<2x128xf32>
    %80 = arith.addf %79, %78 : vector<2x128xf32>
    %cst_35 = arith.constant 1.000000e+00 : f32
    %81 = vector.broadcast %cst_35 : f32 to vector<2x128xf32>
    %82 = arith.divf %81, %80 : vector<2x128xf32>
    %83 = vector.shape_cast %82 : vector<2x128xf32> to vector<2x1x128xf32>
    %84 = vector.broadcast %83 : vector<2x1x128xf32> to vector<2x16x128xf32>
    %85 = vector.shape_cast %5 : vector<32x128xf32> to vector<2x16x128xf32>
    %86 = arith.mulf %60, %84 : vector<2x16x128xf32>
    %87 = arith.addf %86, %85 : vector<2x16x128xf32>
    %88 = arith.truncf %87 : vector<2x16x128xf32> to vector<2x16x128xbf16>
    %c0_36 = arith.constant 0 : index
    %c0_37 = arith.constant 0 : index
    %c0_38 = arith.constant 0 : index
    %89 = vector.load %arg12[%c0_36, %c0_37, %c0_38] : memref<2x16x128xbf16, #tpu.memory_space<vmem>>, vector<2x16x128xbf16>
    tpu.vector_store %arg12[%c0_36, %c0_37, %c0_38], %88 {strides = array<i32>} : memref<2x16x128xbf16, #tpu.memory_space<vmem>>, vector<2x16x128xbf16>,
    return
  }
  func.func @transform_0(%arg0: i32) -> (i32, i32) {
    %c0_i32 = arith.constant 0 : i32
    %c0_i32_0 = arith.constant 0 : i32
    return %arg0, %c0_i32 : i32, i32
  }
  func.func @transform_1(%arg0: i32) -> (i32, i32) {
    %c0_i32 = arith.constant 0 : i32
    %c0_i32_0 = arith.constant 0 : i32
    %c0_i32_1 = arith.constant 0 : i32
    return %c0_i32, %c0_i32_0 : i32, i32
  }
  func.func @transform_2(%arg0: i32) -> (i32, i32) {
    %c0_i32 = arith.constant 0 : i32
    %c0_i32_0 = arith.constant 0 : i32
    %c0_i32_1 = arith.constant 0 : i32
    return %c0_i32, %c0_i32_0 : i32, i32
  }
  func.func @transform_3(%arg0: i32) -> (i32, i32) {
    %c0_i32 = arith.constant 0 : i32
    %c0_i32_0 = arith.constant 0 : i32
    %c0_i32_1 = arith.constant 0 : i32
    return %c0_i32, %c0_i32_0 : i32, i32
  }
  func.func @transform_4(%arg0: i32) -> (i32, i32) {
    %c0_i32 = arith.constant 0 : i32
    %c0_i32_0 = arith.constant 0 : i32
    %c0_i32_1 = arith.constant 0 : i32
    return %c0_i32, %c0_i32_0 : i32, i32
  }
  func.func @transform_5(%arg0: i32) -> (i32, i32) {
    %c0_i32 = arith.constant 0 : i32
    %c0_i32_0 = arith.constant 0 : i32
    %c0_i32_1 = arith.constant 0 : i32
    return %c0_i32, %c0_i32_0 : i32, i32
  }
  func.func @transform_6(%arg0: i32) -> (i32, i32) {
    %c0_i32 = arith.constant 0 : i32
    %c0_i32_0 = arith.constant 0 : i32
    %c0_i32_1 = arith.constant 0 : i32
    return %c0_i32, %c0_i32_0 : i32, i32
  }
  func.func @transform_7(%arg0: i32) -> (i32, i32) {
    %c0_i32 = arith.constant 0 : i32
    %c0_i32_0 = arith.constant 0 : i32
    %c0_i32_1 = arith.constant 0 : i32
    return %c0_i32, %c0_i32_0 : i32, i32
  }
  func.func @transform_8(%arg0: i32) -> (i32, i32) {
    %c0_i32 = arith.constant 0 : i32
    %c0_i32_0 = arith.constant 0 : i32
    %c0_i32_1 = arith.constant 0 : i32
    return %c0_i32, %c0_i32_0 : i32, i32
  }
  func.func @transform_9(%arg0: i32) -> (i32, i32) {
    %c0_i32 = arith.constant 0 : i32
    %c0_i32_0 = arith.constant 0 : i32
    %c0_i32_1 = arith.constant 0 : i32
    return %c0_i32, %c0_i32_0 : i32, i32
  }
  func.func @transform_10(%arg0: i32) -> (i32, i32) {
    %c0_i32 = arith.constant 0 : i32
    %c0_i32_0 = arith.constant 0 : i32
    %c0_i32_1 = arith.constant 0 : i32
    return %c0_i32, %c0_i32_0 : i32, i32
  }
  func.func @transform_11(%arg0: i32) -> (i32, i32, i32) {
    %c0_i32 = arith.constant 0 : i32
    %c0_i32_0 = arith.constant 0 : i32
    %c0_i32_1 = arith.constant 0 : i32
    return %arg0, %c0_i32, %c0_i32_0 : i32, i32, i32
  }
}

</mosaic_0001>

<llo_original>
// kernel: tpu_custom_call.1
$region0: #{tpu_custom_call.1}
  #allocation0 [shape = 'u32[]', space=smem, size = 0x4, offset = 0x4, fixed_abs, tag = 'smem constant byte address 0x4 - core index']
  #allocation1 [shape = 'u32[144,128]{1,0:T(1,128)}', space=vmem, size = 0x12000, scoped, tag = 'internal scratch']
  %s0 = inlined_call_operand.vmem [shape: bf16[64,128], index: 0, kind: input, shape index: {}]
  %s1 = inlined_call_operand.vmem [shape: f32[1,128], index: 1, kind: input, shape index: {}]
  %s2 = inlined_call_operand.vmem [shape: f32[1,128], index: 2, kind: input, shape index: {}]
  %s3 = inlined_call_operand.hbm [shape: bf16[384,128], index: 3, kind: input, shape index: {}]
  %s4 = inlined_call_operand.vmem [shape: f32[1,128], index: 4, kind: input, shape index: {}]
  %s5 = inlined_call_operand.vmem [shape: f32[1,128], index: 5, kind: input, shape index: {}]
  %s6 = inlined_call_operand.hbm [shape: bf16[384,128], index: 6, kind: input, shape index: {}]
  %s7 = inlined_call_operand.vmem [shape: f32[128,2], index: 7, kind: input, shape index: {}]
  %s8 = inlined_call_operand.vmem [shape: f32[1,2], index: 8, kind: input, shape index: {}]
  %s9 = inlined_call_operand.vmem [shape: f32[2,128], index: 9, kind: input, shape index: {}]
  %s10 = inlined_call_operand.vmem [shape: f32[1,128], index: 10, kind: input, shape index: {}]
  %s11 = inlined_call_operand.hbm [shape: bf16[4,16,128], index: 11, kind: output, shape index: {}]
  %s12 = sld [smem:[#allocation0]]
  $region85: #{tpu_custom_call.1} parent=0
    _
  %s14 = ssub.s32 1, %s12
  %s15 = scalar_select 0, %s14, %s12
  $region1: #{tpu_custom_call.1} parent=0
    #allocation2 [shape = 'u8[98304]{0}', space=vmem, size = 0x18000, scoped, tag = 'input window, operand 3, single buffered']
    #allocation3 [shape = 's32[2]{0}', space=sflag, size = 0x8, scoped, tag = 'scoped memory for tpu_custom_call.1']
    #allocation4 [shape = 's32[2]{0}', space=sflag, size = 0x8, scoped, tag = 'scoped memory for tpu_custom_call.1']
    #allocation5 [shape = 'u8[98304]{0}', space=vmem, size = 0x18000, scoped, tag = 'input window, operand 6, single buffered']
    #allocation6 [shape = 's32[1]{0}', space=sflag, size = 0x4, scoped, tag = 'scoped memory for tpu_custom_call.1']
    #allocation7 [shape = 'u8[16384]{0}', space=vmem, size = 0x4000, scoped, tag = 'output window, operand 0']
    %16 = vsyncpa [#allocation3], 0
    %17 = vsyncpa [#allocation6], 0
    %18 = vsyncpa [#allocation4], 0
    %s19 = scalar_lea.sflag [#allocation4], 1
    %20 = vsyncpa %s19, 0
    loop: start=0, step=1, limit=4
    $region2: #{tpu_custom_call.1} parent=1 // loop_pre_header
      _
    $region3: #{tpu_custom_call.1} parent=1 // loop_header
      %s22 = sphi 0, %s26
      %p23 = scmp.ge.s32.totalorder %s22, 4
      %s32 = sphi 0, %s34
      %s35 = sphi 0, %s32
      %s36 = sphi 0, %s35
      %s52 = sphi 0, %s36
      %s56 = sphi 0, %s56
      %s58 = sphi 0, %s56
      %s59 = sphi 0, %s58
      %s73 = sphi 0, %s59
      %s77 = sphi 0, %s77
      %s79 = sphi 0, %s77
      %s80 = sphi 0, %s79
      %s94 = sphi 0, %s80
      %s98 = sphi 0, %s98
      %s100 = sphi 0, %s98
      %s101 = sphi 0, %s100
      %s115 = sphi 0, %s101
      %s119 = sphi 0, %s119
      %s121 = sphi 0, %s119
      %s122 = sphi 0, %s121
      %s136 = sphi 0, %s122
      %s140 = sphi 0, %s140
      %s142 = sphi 0, %s140
      %s143 = sphi 0, %s142
      %s157 = sphi 0, %s143
      %s161 = sphi 0, %s161
      %s163 = sphi 0, %s161
      %s164 = sphi 0, %s163
      %s178 = sphi 0, %s164
      %s182 = sphi 0, %s182
      %s184 = sphi 0, %s182
      %s185 = sphi 0, %s184
      %s199 = sphi 0, %s185
      %s203 = sphi 0, %s203
      %s205 = sphi 0, %s203
      %s206 = sphi 0, %s205
      %s220 = sphi 0, %s206
      %s224 = sphi 0, %s224
      %s226 = sphi 0, %s224
      %s227 = sphi 0, %s226
      %s241 = sphi 0, %s227
      %s245 = sphi 0, %s245
      %s247 = sphi 0, %s245
      %s248 = sphi 0, %s247
      %s262 = sphi 0, %s248
      %s268 = sphi 0, %s270
      %s271 = sphi 0, %s268
      %s272 = sphi 0, %s271
      %s288 = sphi 0, %s272
    $region4: #{tpu_custom_call.1} parent=1 // loop_header_branch
      %25 = sbr.rel (%p23) target = $region8
    $region5: #{tpu_custom_call.1} parent=1 // loop_body
      %s27 = ssub.s32 %s22, 1
      %s28 = ssub.s32 %s22, 2
      %s29 = sadd.s32 %s22, 1
      %s30 = ssub.s32 %s22, %s29
      %p31 = scmp.eq.s32.totalorder %s30, 0
      %s33 = sadd.s32 %s32, 1
      %s34 = scalar_select %p31, %s32, %s33
      %p37 = pneg %p31
      %p38 = scmp.eq.s32.totalorder %s22, 1
      %p39 = por %p37, %p38
      %p40 = scmp.ne.s32.totalorder %s32, %s35
      %p41 = scmp.eq.s32.totalorder %s22, 0
      %p42 = por %p40, %p41
      %p43 = scmp.ne.s32.totalorder %s32, %s35
      %p44 = scmp.eq.s32.totalorder %s27, 1
      %p45 = por %p43, %p44
      %p46 = scmp.ne.s32.totalorder %s35, %s36
      %p47 = scmp.eq.s32.totalorder %s27, 0
      %p48 = por %p46, %p47
      %p49 = scmp.ne.s32.totalorder %s35, %s36
      %p50 = scmp.eq.s32.totalorder %s28, 1
      %p51 = por %p49, %p50
      %p53 = scmp.ne.s32.totalorder %s36, %s52
      %p54 = scmp.eq.s32.totalorder %s28, 0
      %p55 = por %p53, %p54
      %s57 = sadd.s32 %s56, 1
      %p60 = scmp.eq.s32.totalorder %s22, 1
      %p61 = scmp.ne.s32.totalorder %s56, %s58
      %p62 = scmp.eq.s32.totalorder %s22, 0
      %p63 = por %p61, %p62
      %p64 = scmp.ne.s32.totalorder %s56, %s58
      %p65 = scmp.eq.s32.totalorder %s27, 1
      %p66 = por %p64, %p65
      %p67 = scmp.ne.s32.totalorder %s58, %s59
      %p68 = scmp.eq.s32.totalorder %s27, 0
      %p69 = por %p67, %p68
      %p70 = scmp.ne.s32.totalorder %s58, %s59
      %p71 = scmp.eq.s32.totalorder %s28, 1
      %p72 = por %p70, %p71
      %p74 = scmp.ne.s32.totalorder %s59, %s73
      %p75 = scmp.eq.s32.totalorder %s28, 0
      %p76 = por %p74, %p75
      %s78 = sadd.s32 %s77, 1
      %p81 = scmp.eq.s32.totalorder %s22, 1
      %p82 = scmp.ne.s32.totalorder %s77, %s79
      %p83 = scmp.eq.s32.totalorder %s22, 0
      %p84 = por %p82, %p83
      %p85 = scmp.ne.s32.totalorder %s77, %s79
      %p86 = scmp.eq.s32.totalorder %s27, 1
      %p87 = por %p85, %p86
      %p88 = scmp.ne.s32.totalorder %s79, %s80
      %p89 = scmp.eq.s32.totalorder %s27, 0
      %p90 = por %p88, %p89
      %p91 = scmp.ne.s32.totalorder %s79, %s80
      %p92 = scmp.eq.s32.totalorder %s28, 1
      %p93 = por %p91, %p92
      %p95 = scmp.ne.s32.totalorder %s80, %s94
      %p96 = scmp.eq.s32.totalorder %s28, 0
      %p97 = por %p95, %p96
      %s99 = sadd.s32 %s98, 1
      %p102 = scmp.eq.s32.totalorder %s22, 1
      %p103 = scmp.ne.s32.totalorder %s98, %s100
      %p104 = scmp.eq.s32.totalorder %s22, 0
      %p105 = por %p103, %p104
      %p106 = scmp.ne.s32.totalorder %s98, %s100
      %p107 = scmp.eq.s32.totalorder %s27, 1
      %p108 = por %p106, %p107
      %p109 = scmp.ne.s32.totalorder %s100, %s101
      %p110 = scmp.eq.s32.totalorder %s27, 0
      %p111 = por %p109, %p110
      %p112 = scmp.ne.s32.totalorder %s100, %s101
      %p113 = scmp.eq.s32.totalorder %s28, 1
      %p114 = por %p112, %p113
      %p116 = scmp.ne.s32.totalorder %s101, %s115
      %p117 = scmp.eq.s32.totalorder %s28, 0
      %p118 = por %p116, %p117
      %s120 = sadd.s32 %s119, 1
      %p123 = scmp.eq.s32.totalorder %s22, 1
      %p124 = scmp.ne.s32.totalorder %s119, %s121
      %p125 = scmp.eq.s32.totalorder %s22, 0
      %p126 = por %p124, %p125
      %p127 = scmp.ne.s32.totalorder %s119, %s121
      %p128 = scmp.eq.s32.totalorder %s27, 1
      %p129 = por %p127, %p128
      %p130 = scmp.ne.s32.totalorder %s121, %s122
      %p131 = scmp.eq.s32.totalorder %s27, 0
      %p132 = por %p130, %p131
      %p133 = scmp.ne.s32.totalorder %s121, %s122
      %p134 = scmp.eq.s32.totalorder %s28, 1
      %p135 = por %p133, %p134
      %p137 = scmp.ne.s32.totalorder %s122, %s136
      %p138 = scmp.eq.s32.totalorder %s28, 0
      %p139 = por %p137, %p138
      %s141 = sadd.s32 %s140, 1
      %p144 = scmp.eq.s32.totalorder %s22, 1
      %p145 = scmp.ne.s32.totalorder %s140, %s142
      %p146 = scmp.eq.s32.totalorder %s22, 0
      %p147 = por %p145, %p146
      %p148 = scmp.ne.s32.totalorder %s140, %s142
      %p149 = scmp.eq.s32.totalorder %s27, 1
      %p150 = por %p148, %p149
      %p151 = scmp.ne.s32.totalorder %s142, %s143
      %p152 = scmp.eq.s32.totalorder %s27, 0
      %p153 = por %p151, %p152
      %p154 = scmp.ne.s32.totalorder %s142, %s143
      %p155 = scmp.eq.s32.totalorder %s28, 1
      %p156 = por %p154, %p155
      %p158 = scmp.ne.s32.totalorder %s143, %s157
      %p159 = scmp.eq.s32.totalorder %s28, 0
      %p160 = por %p158, %p159
      %s162 = sadd.s32 %s161, 1
      %p165 = scmp.eq.s32.totalorder %s22, 1
      %p166 = scmp.ne.s32.totalorder %s161, %s163
      %p167 = scmp.eq.s32.totalorder %s22, 0
      %p168 = por %p166, %p167
      %p169 = scmp.ne.s32.totalorder %s161, %s163
      %p170 = scmp.eq.s32.totalorder %s27, 1
      %p171 = por %p169, %p170
      %p172 = scmp.ne.s32.totalorder %s163, %s164
      %p173 = scmp.eq.s32.totalorder %s27, 0
      %p174 = por %p172, %p173
      %p175 = scmp.ne.s32.totalorder %s163, %s164
      %p176 = scmp.eq.s32.totalorder %s28, 1
      %p177 = por %p175, %p176
      %p179 = scmp.ne.s32.totalorder %s164, %s178
      %p180 = scmp.eq.s32.totalorder %s28, 0
      %p181 = por %p179, %p180
      %s183 = sadd.s32 %s182, 1
      %p186 = scmp.eq.s32.totalorder %s22, 1
      %p187 = scmp.ne.s32.totalorder %s182, %s184
      %p188 = scmp.eq.s32.totalorder %s22, 0
      %p189 = por %p187, %p188
      %p190 = scmp.ne.s32.totalorder %s182, %s184
      %p191 = scmp.eq.s32.totalorder %s27, 1
      %p192 = por %p190, %p191
      %p193 = scmp.ne.s32.totalorder %s184, %s185
      %p194 = scmp.eq.s32.totalorder %s27, 0
      %p195 = por %p193, %p194
      %p196 = scmp.ne.s32.totalorder %s184, %s185
      %p197 = scmp.eq.s32.totalorder %s28, 1
      %p198 = por %p196, %p197
      %p200 = scmp.ne.s32.totalorder %s185, %s199
      %p201 = scmp.eq.s32.totalorder %s28, 0
      %p202 = por %p200, %p201
      %s204 = sadd.s32 %s203, 1
      %p207 = scmp.eq.s32.totalorder %s22, 1
      %p208 = scmp.ne.s32.totalorder %s203, %s205
      %p209 = scmp.eq.s32.totalorder %s22, 0
      %p210 = por %p208, %p209
      %p211 = scmp.ne.s32.totalorder %s203, %s205
      %p212 = scmp.eq.s32.totalorder %s27, 1
      %p213 = por %p211, %p212
      %p214 = scmp.ne.s32.totalorder %s205, %s206
      %p215 = scmp.eq.s32.totalorder %s27, 0
      %p216 = por %p214, %p215
      %p217 = scmp.ne.s32.totalorder %s205, %s206
      %p218 = scmp.eq.s32.totalorder %s28, 1
      %p219 = por %p217, %p218
      %p221 = scmp.ne.s32.totalorder %s206, %s220
      %p222 = scmp.eq.s32.totalorder %s28, 0
      %p223 = por %p221, %p222
      %s225 = sadd.s32 %s224, 1
      %p228 = scmp.eq.s32.totalorder %s22, 1
      %p229 = scmp.ne.s32.totalorder %s224, %s226
      %p230 = scmp.eq.s32.totalorder %s22, 0
      %p231 = por %p229, %p230
      %p232 = scmp.ne.s32.totalorder %s224, %s226
      %p233 = scmp.eq.s32.totalorder %s27, 1
      %p234 = por %p232, %p233
      %p235 = scmp.ne.s32.totalorder %s226, %s227
      %p236 = scmp.eq.s32.totalorder %s27, 0
      %p237 = por %p235, %p236
      %p238 = scmp.ne.s32.totalorder %s226, %s227
      %p239 = scmp.eq.s32.totalorder %s28, 1
      %p240 = por %p238, %p239
      %p242 = scmp.ne.s32.totalorder %s227, %s241
      %p243 = scmp.eq.s32.totalorder %s28, 0
      %p244 = por %p242, %p243
      %s246 = sadd.s32 %s245, 1
      %p249 = scmp.eq.s32.totalorder %s22, 1
      %p250 = scmp.ne.s32.totalorder %s245, %s247
      %p251 = scmp.eq.s32.totalorder %s22, 0
      %p252 = por %p250, %p251
      %p253 = scmp.ne.s32.totalorder %s245, %s247
      %p254 = scmp.eq.s32.totalorder %s27, 1
      %p255 = por %p253, %p254
      %p256 = scmp.ne.s32.totalorder %s247, %s248
      %p257 = scmp.eq.s32.totalorder %s27, 0
      %p258 = por %p256, %p257
      %p259 = scmp.ne.s32.totalorder %s247, %s248
      %p260 = scmp.eq.s32.totalorder %s28, 1
      %p261 = por %p259, %p260
      %p263 = scmp.ne.s32.totalorder %s248, %s262
      %p264 = scmp.eq.s32.totalorder %s28, 0
      %p265 = por %p263, %p264
      %s266 = ssub.s32 %s22, %s29
      %p267 = scmp.eq.s32.totalorder %s266, 0
      %s269 = sadd.s32 %s268, 1
      %s270 = scalar_select %p267, %s268, %s269
      %p273 = pneg %p267
      %p274 = scmp.eq.s32.totalorder %s22, 1
      %p275 = por %p273, %p274
      %p276 = scmp.ne.s32.totalorder %s268, %s271
      %p277 = scmp.eq.s32.totalorder %s22, 0
      %p278 = por %p276, %p277
      %p279 = scmp.ne.s32.totalorder %s268, %s271
      %p280 = scmp.eq.s32.totalorder %s27, 1
      %p281 = por %p279, %p280
      %p282 = scmp.ne.s32.totalorder %s271, %s272
      %p283 = scmp.eq.s32.totalorder %s27, 0
      %p284 = por %p282, %p283
      %p285 = scmp.ne.s32.totalorder %s271, %s272
      %p286 = scmp.eq.s32.totalorder %s28, 1
      %p287 = por %p285, %p286
      %p289 = scmp.ne.s32.totalorder %s272, %s288
      %p290 = scmp.eq.s32.totalorder %s28, 0
      %p291 = por %p289, %p290
      %p292 = scmp.le.s32.totalorder 1, %s22
      %p293 = scmp.lt.s32.totalorder %s22, 3
      %p294 = pnand %p292, %p293
      %p295 = pneg %p294
      // Predicated region
      $region9: #{tpu_custom_call.1} parent=5 // pred_check
        _
      $region10: #{tpu_custom_call.1} parent=5 // pred_check_branch
        %297 = sbr.rel (%p294) target = $region12
      $region11: #{tpu_custom_call.1} parent=5 // pred_region
        %s298 = ssub.s32 %s22, 1
        // Predicated region
        $region13: #{tpu_custom_call.1} parent=11 // pred_check
          %p299 = pneg %p69
        $region14: #{tpu_custom_call.1} parent=11 // pred_check_branch
          %301 = sbr.rel (%p299) target = $region16
        $region15: #{tpu_custom_call.1} parent=11 // pred_region
          _
        $region16: #{tpu_custom_call.1} parent=11 // pred_fallthru
          _
        // Predicated region
        $region17: #{tpu_custom_call.1} parent=11 // pred_check
          %p302 = pneg %p90
        $region18: #{tpu_custom_call.1} parent=11 // pred_check_branch
          %304 = sbr.rel (%p302) target = $region20
        $region19: #{tpu_custom_call.1} parent=11 // pred_region
          _
        $region20: #{tpu_custom_call.1} parent=11 // pred_fallthru
          _
        // Predicated region
        $region21: #{tpu_custom_call.1} parent=11 // pred_check
          %p305 = pneg %p111
        $region22: #{tpu_custom_call.1} parent=11 // pred_check_branch
          %307 = sbr.rel (%p305) target = $region24
        $region23: #{tpu_custom_call.1} parent=11 // pred_region
          %s309 = ssub.s32 3072, 3072
          %310 = vsyncadd [#allocation3], %s309
          %s311 = sshll.u32 [#allocation2], 4
          %s312 = int_to_ptr.vmem [resolvable:$true] %s311
          %317 = dma.hbm_to_vmem [thread:$0]  %s3, 3072, %s312, [#allocation3], 64, 64, 4
        $region24: #{tpu_custom_call.1} parent=11 // pred_fallthru
          _
        // Predicated region
        $region25: #{tpu_custom_call.1} parent=11 // pred_check
          %p318 = pneg %p132
        $region26: #{tpu_custom_call.1} parent=11 // pred_check_branch
          %320 = sbr.rel (%p318) target = $region28
        $region27: #{tpu_custom_call.1} parent=11 // pred_region
          _
        $region28: #{tpu_custom_call.1} parent=11 // pred_fallthru
          _
        // Predicated region
        $region29: #{tpu_custom_call.1} parent=11 // pred_check
          %p321 = pneg %p153
        $region30: #{tpu_custom_call.1} parent=11 // pred_check_branch
          %323 = sbr.rel (%p321) target = $region32
        $region31: #{tpu_custom_call.1} parent=11 // pred_region
          _
        $region32: #{tpu_custom_call.1} parent=11 // pred_fallthru
          _
        // Predicated region
        $region33: #{tpu_custom_call.1} parent=11 // pred_check
          %p324 = pneg %p174
        $region34: #{tpu_custom_call.1} parent=11 // pred_check_branch
          %326 = sbr.rel (%p324) target = $region36
        $region35: #{tpu_custom_call.1} parent=11 // pred_region
          %s328 = ssub.s32 3072, 3072
          %329 = vsyncadd [#allocation6], %s328
          %s330 = sshll.u32 [#allocation5], 4
          %s331 = int_to_ptr.vmem [resolvable:$true] %s330
          %336 = dma.hbm_to_vmem [thread:$0]  %s6, 3072, %s331, [#allocation6], 64, 64, 4
        $region36: #{tpu_custom_call.1} parent=11 // pred_fallthru
          _
        // Predicated region
        $region37: #{tpu_custom_call.1} parent=11 // pred_check
          %p337 = pneg %p195
        $region38: #{tpu_custom_call.1} parent=11 // pred_check_branch
          %339 = sbr.rel (%p337) target = $region40
        $region39: #{tpu_custom_call.1} parent=11 // pred_region
          _
        $region40: #{tpu_custom_call.1} parent=11 // pred_fallthru
          _
        // Predicated region
        $region41: #{tpu_custom_call.1} parent=11 // pred_check
          %p340 = pneg %p216
        $region42: #{tpu_custom_call.1} parent=11 // pred_check_branch
          %342 = sbr.rel (%p340) target = $region44
        $region43: #{tpu_custom_call.1} parent=11 // pred_region
          _
        $region44: #{tpu_custom_call.1} parent=11 // pred_fallthru
          _
        // Predicated region
        $region45: #{tpu_custom_call.1} parent=11 // pred_check
          %p343 = pneg %p237
        $region46: #{tpu_custom_call.1} parent=11 // pred_check_branch
          %345 = sbr.rel (%p343) target = $region48
        $region47: #{tpu_custom_call.1} parent=11 // pred_region
          _
        $region48: #{tpu_custom_call.1} parent=11 // pred_fallthru
          _
        // Predicated region
        $region49: #{tpu_custom_call.1} parent=11 // pred_check
          %p346 = pneg %p258
        $region50: #{tpu_custom_call.1} parent=11 // pred_check_branch
          %348 = sbr.rel (%p346) target = $region52
        $region51: #{tpu_custom_call.1} parent=11 // pred_region
          _
        $region52: #{tpu_custom_call.1} parent=11 // pred_fallthru
          _
      $region12: #{tpu_custom_call.1} parent=5 // pred_fallthru
        _
      %p349 = scmp.lt.s32.totalorder %s22, 2
      // Predicated region
      $region53: #{tpu_custom_call.1} parent=5 // pred_check
        %p350 = pneg %p349
      $region54: #{tpu_custom_call.1} parent=5 // pred_check_branch
        %352 = sbr.rel (%p350) target = $region56
      $region55: #{tpu_custom_call.1} parent=5 // pred_region
        // Predicated region
        $region57: #{tpu_custom_call.1} parent=55 // pred_check
          %p353 = pneg %p42
        $region58: #{tpu_custom_call.1} parent=55 // pred_check_branch
          %355 = sbr.rel (%p353) target = $region60
        $region59: #{tpu_custom_call.1} parent=55 // pred_region
          %s356 = smul.u32 4, %s22
          %p357 = scmp.lt.s32.totalorder %s356, 7
          %s358 = scalar_select %p357, %s356, 7
          %s359 = smul.addr %s358, 4
          %s360 = scalar_lea.vmem %s0, %s359
          %s361 = smul.u32 4, %s22
        $region60: #{tpu_custom_call.1} parent=55 // pred_fallthru
          _
      $region56: #{tpu_custom_call.1} parent=5 // pred_fallthru
        _
      %p362 = scmp.le.s32.totalorder 1, %s22
      %p363 = scmp.lt.s32.totalorder %s22, 3
      %p364 = pnand %p362, %p363
      %p365 = pneg %p364
      // Predicated region
      $region61: #{tpu_custom_call.1} parent=5 // pred_check
        _
      $region62: #{tpu_custom_call.1} parent=5 // pred_check_branch
        %367 = sbr.rel (%p364) target = $region64
      $region63: #{tpu_custom_call.1} parent=5 // pred_region
        %s368 = ssub.s32 %s22, 1
        // Predicated region
        $region65: #{tpu_custom_call.1} parent=63 // pred_check
          %p369 = pneg %p111
        $region66: #{tpu_custom_call.1} parent=63 // pred_check_branch
          %371 = sbr.rel (%p369) target = $region68
        $region67: #{tpu_custom_call.1} parent=63 // pred_region
          %372 = dma.done [#allocation3], 3072
        $region68: #{tpu_custom_call.1} parent=63 // pred_fallthru
          _
        // Predicated region
        $region69: #{tpu_custom_call.1} parent=63 // pred_check
          %p373 = pneg %p174
        $region70: #{tpu_custom_call.1} parent=63 // pred_check_branch
          %375 = sbr.rel (%p373) target = $region72
        $region71: #{tpu_custom_call.1} parent=63 // pred_region
          %376 = dma.done [#allocation6], 3072
        $region72: #{tpu_custom_call.1} parent=63 // pred_fallthru
          _
        %s377 = smul.u32 4, %s27
        %p378 = scmp.lt.s32.totalorder %s377, 7
        %s379 = scalar_select %p378, %s377, 7
        %s380 = smul.addr %s379, 4
        %s381 = scalar_lea.vmem %s0, %s380
        %p382 = pneg %p48
        %p383 = pneg %p45
        %p384 = pneg %p69
        %p385 = pneg %p66
        %p386 = pneg %p90
        %p387 = pneg %p87
        %p388 = pneg %p111
        %p389 = pneg %p108
        %p390 = pneg %p132
        %p391 = pneg %p129
        %p392 = pneg %p153
        %p393 = pneg %p150
        %p394 = pneg %p174
        %p395 = pneg %p171
        %p396 = pneg %p195
        %p397 = pneg %p192
        %p398 = pneg %p216
        %p399 = pneg %p213
        %p400 = pneg %p237
        %p401 = pneg %p234
        %p402 = pneg %p258
        %p403 = pneg %p255
        %p404 = pneg %p284
        %p405 = pneg %p281
        %s406 = sand.u32 %s271, 1
        %s407 = scalar_lea.sflag [#allocation4], %s406
        %s408 = sand.u32 %s271, 1
        %s409 = smul.addr %s408, 16
        %s410 = scalar_lea.vmem [#allocation7], %s409
        %s411 = smul.u32 4, %s27
        %p412 = scmp.lt.s32.totalorder %s411, 7
        %s413 = scalar_select %p412, %s411, 7
        %s414 = smul.addr %s413, 4
        %s415 = scalar_lea.vmem %s0, %s414
        %s416 = smul.u32 4, %s27
        %s417 = smul.u32 2, %s27
        %v419 = vld [vmem:[%s1] sm:$0x1]
        %v420 = vld [vmem:[%s2] sm:$0x1]
        %v421 = vlaneseq
        %v422 = vshrl.u32 %v421, 7
        %v423 = vadd.s32 %v422, 8
        %v424 = vld [vmem:[%s415] sm:$0xf]
        %v425 = vld [vmem:[%s415 + $0x4] sm:$0xf]
        %v426 = vld [vmem:[%s415 + $0x8] sm:$0xf]
        %v427 = vld [vmem:[%s415 + $0xc] sm:$0xf]
        %v428 = vunpack.c.l.bf16 %v424
        %v429 = vunpack.c.l.bf16 %v425
        %v430 = vunpack.c.l.bf16 %v426
        %v431 = vunpack.c.l.bf16 %v427
        %v433 = vlaneseq
        %v434 = vshrl.u32 %v433, 7
        %v435 = vsub.s32 0, %v434
        %v436 = vrot.slane %v419, %v435
        %v438 = vmul.f32 %v428, %v436
        %v439 = vmul.f32 %v429, %v436
        %v440 = vmul.f32 %v430, %v436
        %v441 = vmul.f32 %v431, %v436
        %v443 = vlaneseq
        %v444 = vshrl.u32 %v443, 7
        %v445 = vsub.s32 0, %v444
        %v446 = vrot.slane %v420, %v445
        %v448 = vadd.f32 %v438, %v446
        %v449 = vadd.f32 %v439, %v446
        %v450 = vadd.f32 %v440, %v446
        %v451 = vadd.f32 %v441, %v446
        %v452 = vmax.f32 %v448, 0.0
        %v453 = vmax.f32 %v449, 0.0
        %v454 = vmax.f32 %v450, 0.0
        %v455 = vmax.f32 %v451, 0.0
        %vm456 = vcmp.ne.s32.totalorder %v422, 0
        %vm457 = vcmp.ne.s32.totalorder %v423, 0
        %v458 = vsel %vm456, 1, 0
        %v459 = vsel %vm457, 1, 0
        %v460 = vcvt.s32.f32 %v458
        %v461 = vcvt.s32.f32 %v459
        %v462 = vrot.slane %v452, 7
        %v463 = vrot.slane %v453, 7
        %v464 = vrot.slane %v454, 7
        %v465 = vrot.slane %v455, 7
        %vm466 = vcmp.lt.s32.totalorder %v422, 1
        %v467 = vsel %vm466, %v464, %v465
        %v468 = vsel %vm466, %v463, %v464
        %v469 = vsel %vm466, %v462, %v463
        %v470 = vsel %vm466, %v465, %v462
        %v471 = vmul.f32 %v470, %v460
        %v472 = vmul.f32 %v469, %v461
        %v473 = vmul.f32 %v468, %v460
        %v474 = vmul.f32 %v467, %v461
        %vm475 = vcmp.ne.s32.totalorder %v422, 15
        %vm476 = vcmp.ne.s32.totalorder %v423, 15
        %v477 = vsel %vm475, 1, 0
        %v478 = vsel %vm476, 1, 0
        %v479 = vcvt.s32.f32 %v477
        %v480 = vcvt.s32.f32 %v478
        %v481 = vrot.slane %v452, 1
        %v482 = vrot.slane %v453, 1
        %v483 = vrot.slane %v454, 1
        %v484 = vrot.slane %v455, 1
        %vm485 = vcmp.lt.s32.totalorder %v422, 7
        %v486 = vsel %vm485, %v483, %v484
        %v487 = vsel %vm485, %v482, %v483
        %v488 = vsel %vm485, %v481, %v482
        %v489 = vsel %vm485, %v484, %v481
        %v490 = vmul.f32 %v488, %v479
        %v491 = vmul.f32 %v487, %v480
        %v492 = vmul.f32 %v486, %v479
        %v493 = vmul.f32 %v489, %v480
        %v494 = vpack.c.bf16 %v472, %v471
        %v495 = vpack.c.bf16 %v474, %v473
        %v496 = vpack.c.bf16 %v453, %v452
        %v497 = vpack.c.bf16 %v455, %v454
        %v498 = vpack.c.bf16 %v491, %v490
        %v499 = vpack.c.bf16 %v493, %v492
        %v500 = vld [vmem:[#allocation2] sm:$0xf]
        %v501 = vld [vmem:[#allocation2 + $0x4] sm:$0xf]
        %v502 = vld [vmem:[#allocation2 + $0x8] sm:$0xf]
        %v503 = vld [vmem:[#allocation2 + $0xc] sm:$0xf]
        %v504 = vld [vmem:[#allocation2 + $0x10] sm:$0xf]
        %v505 = vld [vmem:[#allocation2 + $0x14] sm:$0xf]
        %v506 = vld [vmem:[#allocation2 + $0x18] sm:$0xf]
        %v507 = vld [vmem:[#allocation2 + $0x1c] sm:$0xf]
        %v508 = vld [vmem:[#allocation2 + $0x20] sm:$0xf]
        %v509 = vld [vmem:[#allocation2 + $0x24] sm:$0xf]
        %v510 = vld [vmem:[#allocation2 + $0x28] sm:$0xf]
        %v511 = vld [vmem:[#allocation2 + $0x2c] sm:$0xf]
        %v512 = vld [vmem:[#allocation2 + $0x30] sm:$0xf]
        %v513 = vld [vmem:[#allocation2 + $0x34] sm:$0xf]
        %v514 = vld [vmem:[#allocation2 + $0x38] sm:$0xf]
        %v515 = vld [vmem:[#allocation2 + $0x3c] sm:$0xf]
        %v516 = vld [vmem:[#allocation2 + $0x40] sm:$0xf]
        %v517 = vld [vmem:[#allocation2 + $0x44] sm:$0xf]
        %v518 = vld [vmem:[#allocation2 + $0x48] sm:$0xf]
        %v519 = vld [vmem:[#allocation2 + $0x4c] sm:$0xf]
        %v520 = vld [vmem:[#allocation2 + $0x50] sm:$0xf]
        %v521 = vld [vmem:[#allocation2 + $0x54] sm:$0xf]
        %v522 = vld [vmem:[#allocation2 + $0x58] sm:$0xf]
        %v523 = vld [vmem:[#allocation2 + $0x5c] sm:$0xf]
        %v524 = vld [vmem:[#allocation2 + $0x60] sm:$0xf]
        %v525 = vld [vmem:[#allocation2 + $0x64] sm:$0xf]
        %v526 = vld [vmem:[#allocation2 + $0x68] sm:$0xf]
        %v527 = vld [vmem:[#allocation2 + $0x6c] sm:$0xf]
        %v528 = vld [vmem:[#allocation2 + $0x70] sm:$0xf]
        %v529 = vld [vmem:[#allocation2 + $0x74] sm:$0xf]
        %v530 = vld [vmem:[#allocation2 + $0x78] sm:$0xf]
        %v531 = vld [vmem:[#allocation2 + $0x7c] sm:$0xf]
        %v532 = vld [vmem:[#allocation2 + $0x80] sm:$0xf]
        %v533 = vld [vmem:[#allocation2 + $0x84] sm:$0xf]
        %v534 = vld [vmem:[#allocation2 + $0x88] sm:$0xf]
        %v535 = vld [vmem:[#allocation2 + $0x8c] sm:$0xf]
        %v536 = vld [vmem:[#allocation2 + $0x90] sm:$0xf]
        %v537 = vld [vmem:[#allocation2 + $0x94] sm:$0xf]
        %v538 = vld [vmem:[#allocation2 + $0x98] sm:$0xf]
        %v539 = vld [vmem:[#allocation2 + $0x9c] sm:$0xf]
        %v540 = vld [vmem:[#allocation2 + $0xa0] sm:$0xf]
        %v541 = vld [vmem:[#allocation2 + $0xa4] sm:$0xf]
        %v542 = vld [vmem:[#allocation2 + $0xa8] sm:$0xf]
        %v543 = vld [vmem:[#allocation2 + $0xac] sm:$0xf]
        %v544 = vld [vmem:[#allocation2 + $0xb0] sm:$0xf]
        %v545 = vld [vmem:[#allocation2 + $0xb4] sm:$0xf]
        %v546 = vld [vmem:[#allocation2 + $0xb8] sm:$0xf]
        %v547 = vld [vmem:[#allocation2 + $0xbc] sm:$0xf]
        %v596 = vunpack.c.l.b16 %v500
        %v597 = vunpack.c.l.b16 %v501
        %v598 = vunpack.c.l.b16 %v502
        %v599 = vunpack.c.l.b16 %v503
        %v600 = vunpack.c.l.b16 %v504
        %v601 = vunpack.c.l.b16 %v505
        %v602 = vunpack.c.l.b16 %v506
        %v603 = vunpack.c.l.b16 %v507
        %v604 = vunpack.c.l.b16 %v508
        %v605 = vunpack.c.l.b16 %v509
        %v606 = vunpack.c.l.b16 %v510
        %v607 = vunpack.c.l.b16 %v511
        %v608 = vunpack.c.l.b16 %v512
        %v609 = vunpack.c.l.b16 %v513
        %v610 = vunpack.c.l.b16 %v514
        %v611 = vunpack.c.l.b16 %v515
        %v612 = vunpack.c.l.b16 %v516
        %v613 = vunpack.c.l.b16 %v517
        %v614 = vunpack.c.l.b16 %v518
        %v615 = vunpack.c.l.b16 %v519
        %v616 = vunpack.c.l.b16 %v520
        %v617 = vunpack.c.l.b16 %v521
        %v618 = vunpack.c.l.b16 %v522
        %v619 = vunpack.c.l.b16 %v523
        %v620 = vunpack.c.l.b16 %v524
        %v621 = vunpack.c.l.b16 %v525
        %v622 = vunpack.c.l.b16 %v526
        %v623 = vunpack.c.l.b16 %v527
        %v624 = vunpack.c.l.b16 %v528
        %v625 = vunpack.c.l.b16 %v529
        %v626 = vunpack.c.l.b16 %v530
        %v627 = vunpack.c.l.b16 %v531
        %v628 = vunpack.c.l.b16 %v532
        %v629 = vunpack.c.l.b16 %v533
        %v630 = vunpack.c.l.b16 %v534
        %v631 = vunpack.c.l.b16 %v535
        %v632 = vunpack.c.l.b16 %v536
        %v633 = vunpack.c.l.b16 %v537
        %v634 = vunpack.c.l.b16 %v538
        %v635 = vunpack.c.l.b16 %v539
        %v636 = vunpack.c.l.b16 %v540
        %v637 = vunpack.c.l.b16 %v541
        %v638 = vunpack.c.l.b16 %v542
        %v639 = vunpack.c.l.b16 %v543
        %v640 = vunpack.c.l.b16 %v544
        %v641 = vunpack.c.l.b16 %v545
        %v642 = vunpack.c.l.b16 %v546
        %v643 = vunpack.c.l.b16 %v547
        %v644 = vpack.c.b16 %v597, %v596
        %v645 = vpack.c.b16 %v599, %v598
        %v646 = vpack.c.b16 %v601, %v600
        %v647 = vpack.c.b16 %v603, %v602
        %v648 = vpack.c.b16 %v605, %v604
        %v649 = vpack.c.b16 %v607, %v606
        %v650 = vpack.c.b16 %v609, %v608
        %v651 = vpack.c.b16 %v611, %v610
        %v652 = vpack.c.b16 %v613, %v612
        %v653 = vpack.c.b16 %v615, %v614
        %v654 = vpack.c.b16 %v617, %v616
        %v655 = vpack.c.b16 %v619, %v618
        %v656 = vpack.c.b16 %v621, %v620
        %v657 = vpack.c.b16 %v623, %v622
        %v658 = vpack.c.b16 %v625, %v624
        %v659 = vpack.c.b16 %v627, %v626
        %v660 = vpack.c.b16 %v629, %v628
        %v661 = vpack.c.b16 %v631, %v630
        %v662 = vpack.c.b16 %v633, %v632
        %v663 = vpack.c.b16 %v635, %v634
        %v664 = vpack.c.b16 %v637, %v636
        %v665 = vpack.c.b16 %v639, %v638
        %v666 = vpack.c.b16 %v641, %v640
        %v667 = vpack.c.b16 %v643, %v642
        %692 = vmatprep.subr.bf16.mxu0 0
        %693 = vmatpush1.bf16.msra.mxu0 %v644
        %694 = vmatprep.subr.bf16.mxu0 0
        %695 = vmatpush1.bf16.msra.mxu0 %v645
        %696 = vmatprep.subr.bf16.mxu0 0
        %697 = vmatpush1.bf16.msra.mxu0 %v646
        %698 = vmatprep.subr.bf16.mxu0 0
        %699 = vmatpush1.bf16.msra.mxu0 %v647
        %700 = vmatprep.subr.bf16.mxu0 0
        %701 = vmatpush1.bf16.msra.mxu0 %v648
        %702 = vmatprep.subr.bf16.mxu0 0
        %703 = vmatpush1.bf16.msra.mxu0 %v649
        %704 = vmatprep.subr.bf16.mxu0 0
        %705 = vmatpush1.bf16.msra.mxu0 %v650
        %706 = vmatprep.subr.bf16.mxu0 0
        %707 = vmatpush1.bf16.msra.mxu0 %v651
        %708 = vmatprep.subr.bf16.mxu0 0
        %709 = vmatpush1.bf16.msra.mxu0 %v652
        %710 = vmatprep.subr.bf16.mxu0 0
        %711 = vmatpush1.bf16.msra.mxu0 %v653
        %712 = vmatprep.subr.bf16.mxu0 0
        %713 = vmatpush1.bf16.msra.mxu0 %v654
        %714 = vmatprep.subr.bf16.mxu0 0
        %715 = vmatpush1.bf16.msra.mxu0 %v655
        %716 = vmatprep.subr.bf16.mxu0 0
        %717 = vmatpush1.bf16.msra.mxu0 %v656
        %718 = vmatprep.subr.bf16.mxu0 0
        %719 = vmatpush1.bf16.msra.mxu0 %v657
        %720 = vmatprep.subr.bf16.mxu0 0
        %721 = vmatpush1.bf16.msra.mxu0 %v658
        %722 = vmatprep.subr.bf16.mxu0 0
        %723 = vmatpush1.bf16.msra.mxu0 %v659
        %724 = vmatprep.mubr.bf16.mxu0 %v496
        %725 = vmatmul.mubr.bf16.gmra.mrb[0].mxu0 %v494
        %v726 = vpop.f32.mrb[0].mxu0
        %v727 = vadd.f32 0.0, %v726
        %v728 = vpop.f32.mrb[0].mxu0
        %v729 = vpop.f32.mrb[0].mxu0
        %v730 = vadd.f32 0.0, %v729
        %v731 = vpop.f32.mrb[0].mxu0
        %732 = vmatprep.mubr.bf16.mxu0 %v497
        %733 = vmatmul.mubr.bf16.gmra.mrb[0].mxu0 %v495
        %v734 = vpop.f32.mrb[0].mxu0
        %v735 = vadd.f32 0.0, %v734
        %v736 = vpop.f32.mrb[0].mxu0
        %v737 = vpop.f32.mrb[0].mxu0
        %v738 = vadd.f32 0.0, %v737
        %v739 = vpop.f32.mrb[0].mxu0
        %740 = vdwg.mxu0
        %741 = vmatprep.subr.bf16.mxu0 0
        %742 = vmatpush1.bf16.msra.mxu0 %v660
        %743 = vmatprep.subr.bf16.mxu0 0
        %744 = vmatpush1.bf16.msra.mxu0 %v661
        %745 = vmatprep.subr.bf16.mxu0 0
        %746 = vmatpush1.bf16.msra.mxu0 %v662
        %747 = vmatprep.subr.bf16.mxu0 0
        %748 = vmatpush1.bf16.msra.mxu0 %v663
        %749 = vmatprep.subr.bf16.mxu0 0
        %750 = vmatpush1.bf16.msra.mxu0 %v664
        %751 = vmatprep.subr.bf16.mxu0 0
        %752 = vmatpush1.bf16.msra.mxu0 %v665
        %753 = vmatprep.subr.bf16.mxu0 0
        %754 = vmatpush1.bf16.msra.mxu0 %v666
        %755 = vmatprep.subr.bf16.mxu0 0
        %756 = vmatpush1.bf16.msra.mxu0 %v667
        %757 = vmatprep.subr.bf16.mxu0 0
        %758 = vmatpush1.bf16.msra.mxu0 0
        %759 = vmatprep.subr.bf16.mxu0 0
        %760 = vmatpush1.bf16.msra.mxu0 0
        %761 = vmatprep.subr.bf16.mxu0 0
        %762 = vmatpush1.bf16.msra.mxu0 0
        %763 = vmatprep.subr.bf16.mxu0 0
        %764 = vmatpush1.bf16.msra.mxu0 0
        %765 = vmatprep.subr.bf16.mxu0 0
        %766 = vmatpush1.bf16.msra.mxu0 0
        %767 = vmatprep.subr.bf16.mxu0 0
        %768 = vmatpush1.bf16.msra.mxu0 0
        %769 = vmatprep.subr.bf16.mxu0 0
        %770 = vmatpush1.bf16.msra.mxu0 0
        %771 = vmatprep.subr.bf16.mxu0 0
        %772 = vmatpush1.bf16.msra.mxu0 0
        %773 = vmatprep.mubr.bf16.mxu0 0
        %774 = vmatmul.mubr.bf16.gmra.mrb[0].mxu0 %v498
        %v775 = vpop.f32.mrb[0].mxu0
        %v776 = vadd.f32 %v727, %v775
        %v777 = vpop.f32.mrb[0].mxu0
        %v778 = vpop.f32.mrb[0].mxu0
        %v779 = vadd.f32 %v730, %v778
        %v780 = vpop.f32.mrb[0].mxu0
        %781 = vmatprep.mubr.bf16.mxu0 0
        %782 = vmatmul.mubr.bf16.gmra.mrb[0].mxu0 %v499
        %v783 = vpop.f32.mrb[0].mxu0
        %v784 = vadd.f32 %v735, %v783
        %v785 = vpop.f32.mrb[0].mxu0
        %v786 = vpop.f32.mrb[0].mxu0
        %v787 = vadd.f32 %v738, %v786
        %v788 = vpop.f32.mrb[0].mxu0
        %789 = vdwg.mxu0
        %v790 = vld [vmem:[%s4] sm:$0x1]
        %v792 = vlaneseq
        %v793 = vshrl.u32 %v792, 7
        %v794 = vsub.s32 0, %v793
        %v795 = vrot.slane %v790, %v794
        %v797 = vmul.f32 %v776, %v795
        %v798 = vmul.f32 %v779, %v795
        %v799 = vmul.f32 %v784, %v795
        %v800 = vmul.f32 %v787, %v795
        %v801 = vld [vmem:[%s5] sm:$0x1]
        %v803 = vlaneseq
        %v804 = vshrl.u32 %v803, 7
        %v805 = vsub.s32 0, %v804
        %v806 = vrot.slane %v801, %v805
        %v808 = vadd.f32 %v797, %v806
        %v809 = vadd.f32 %v798, %v806
        %v810 = vadd.f32 %v799, %v806
        %v811 = vadd.f32 %v800, %v806
        %v812 = vmax.f32 %v808, 0.0
        %v813 = vmax.f32 %v809, 0.0
        %v814 = vmax.f32 %v810, 0.0
        %v815 = vmax.f32 %v811, 0.0
        %v816 = vrot.slane %v812, 7
        %v817 = vrot.slane %v813, 7
        %v818 = vrot.slane %v814, 7
        %v819 = vrot.slane %v815, 7
        %v820 = vsel %vm466, %v818, %v819
        %v821 = vsel %vm466, %v817, %v818
        %v822 = vsel %vm466, %v816, %v817
        %v823 = vsel %vm466, %v819, %v816
        %v824 = vmul.f32 %v823, %v460
        %v825 = vmul.f32 %v822, %v461
        %v826 = vmul.f32 %v821, %v460
        %v827 = vmul.f32 %v820, %v461
        %v828 = vrot.slane %v812, 1
        %v829 = vrot.slane %v813, 1
        %v830 = vrot.slane %v814, 1
        %v831 = vrot.slane %v815, 1
        %v832 = vsel %vm485, %v830, %v831
        %v833 = vsel %vm485, %v829, %v830
        %v834 = vsel %vm485, %v828, %v829
        %v835 = vsel %vm485, %v831, %v828
        %v836 = vmul.f32 %v834, %v479
        %v837 = vmul.f32 %v833, %v480
        %v838 = vmul.f32 %v832, %v479
        %v839 = vmul.f32 %v835, %v480
        %v840 = vpack.c.bf16 %v825, %v824
        %v841 = vpack.c.bf16 %v827, %v826
        %v842 = vpack.c.bf16 %v813, %v812
        %v843 = vpack.c.bf16 %v815, %v814
        %v844 = vpack.c.bf16 %v837, %v836
        %v845 = vpack.c.bf16 %v839, %v838
        %v846 = vld [vmem:[#allocation5] sm:$0xf]
        %v847 = vld [vmem:[#allocation5 + $0x4] sm:$0xf]
        %v848 = vld [vmem:[#allocation5 + $0x8] sm:$0xf]
        %v849 = vld [vmem:[#allocation5 + $0xc] sm:$0xf]
        %v850 = vld [vmem:[#allocation5 + $0x10] sm:$0xf]
        %v851 = vld [vmem:[#allocation5 + $0x14] sm:$0xf]
        %v852 = vld [vmem:[#allocation5 + $0x18] sm:$0xf]
        %v853 = vld [vmem:[#allocation5 + $0x1c] sm:$0xf]
        %v854 = vld [vmem:[#allocation5 + $0x20] sm:$0xf]
        %v855 = vld [vmem:[#allocation5 + $0x24] sm:$0xf]
        %v856 = vld [vmem:[#allocation5 + $0x28] sm:$0xf]
        %v857 = vld [vmem:[#allocation5 + $0x2c] sm:$0xf]
        %v858 = vld [vmem:[#allocation5 + $0x30] sm:$0xf]
        %v859 = vld [vmem:[#allocation5 + $0x34] sm:$0xf]
        %v860 = vld [vmem:[#allocation5 + $0x38] sm:$0xf]
        %v861 = vld [vmem:[#allocation5 + $0x3c] sm:$0xf]
        %v862 = vld [vmem:[#allocation5 + $0x40] sm:$0xf]
        %v863 = vld [vmem:[#allocation5 + $0x44] sm:$0xf]
        %v864 = vld [vmem:[#allocation5 + $0x48] sm:$0xf]
        %v865 = vld [vmem:[#allocation5 + $0x4c] sm:$0xf]
        %v866 = vld [vmem:[#allocation5 + $0x50] sm:$0xf]
        %v867 = vld [vmem:[#allocation5 + $0x54] sm:$0xf]
        %v868 = vld [vmem:[#allocation5 + $0x58] sm:$0xf]
        %v869 = vld [vmem:[#allocation5 + $0x5c] sm:$0xf]
        %v870 = vld [vmem:[#allocation5 + $0x60] sm:$0xf]
        %v871 = vld [vmem:[#allocation5 + $0x64] sm:$0xf]
        %v872 = vld [vmem:[#allocation5 + $0x68] sm:$0xf]
        %v873 = vld [vmem:[#allocation5 + $0x6c] sm:$0xf]
        %v874 = vld [vmem:[#allocation5 + $0x70] sm:$0xf]
        %v875 = vld [vmem:[#allocation5 + $0x74] sm:$0xf]
        %v876 = vld [vmem:[#allocation5 + $0x78] sm:$0xf]
        %v877 = vld [vmem:[#allocation5 + $0x7c] sm:$0xf]
        %v878 = vld [vmem:[#allocation5 + $0x80] sm:$0xf]
        %v879 = vld [vmem:[#allocation5 + $0x84] sm:$0xf]
        %v880 = vld [vmem:[#allocation5 + $0x88] sm:$0xf]
        %v881 = vld [vmem:[#allocation5 + $0x8c] sm:$0xf]
        %v882 = vld [vmem:[#allocation5 + $0x90] sm:$0xf]
        %v883 = vld [vmem:[#allocation5 + $0x94] sm:$0xf]
        %v884 = vld [vmem:[#allocation5 + $0x98] sm:$0xf]
        %v885 = vld [vmem:[#allocation5 + $0x9c] sm:$0xf]
        %v886 = vld [vmem:[#allocation5 + $0xa0] sm:$0xf]
        %v887 = vld [vmem:[#allocation5 + $0xa4] sm:$0xf]
        %v888 = vld [vmem:[#allocation5 + $0xa8] sm:$0xf]
        %v889 = vld [vmem:[#allocation5 + $0xac] sm:$0xf]
        %v890 = vld [vmem:[#allocation5 + $0xb0] sm:$0xf]
        %v891 = vld [vmem:[#allocation5 + $0xb4] sm:$0xf]
        %v892 = vld [vmem:[#allocation5 + $0xb8] sm:$0xf]
        %v893 = vld [vmem:[#allocation5 + $0xbc] sm:$0xf]
        %v942 = vunpack.c.l.b16 %v846
        %v943 = vunpack.c.l.b16 %v847
        %v944 = vunpack.c.l.b16 %v848
        %v945 = vunpack.c.l.b16 %v849
        %v946 = vunpack.c.l.b16 %v850
        %v947 = vunpack.c.l.b16 %v851
        %v948 = vunpack.c.l.b16 %v852
        %v949 = vunpack.c.l.b16 %v853
        %v950 = vunpack.c.l.b16 %v854
        %v951 = vunpack.c.l.b16 %v855
        %v952 = vunpack.c.l.b16 %v856
        %v953 = vunpack.c.l.b16 %v857
        %v954 = vunpack.c.l.b16 %v858
        %v955 = vunpack.c.l.b16 %v859
        %v956 = vunpack.c.l.b16 %v860
        %v957 = vunpack.c.l.b16 %v861
        %v958 = vunpack.c.l.b16 %v862
        %v959 = vunpack.c.l.b16 %v863
        %v960 = vunpack.c.l.b16 %v864
        %v961 = vunpack.c.l.b16 %v865
        %v962 = vunpack.c.l.b16 %v866
        %v963 = vunpack.c.l.b16 %v867
        %v964 = vunpack.c.l.b16 %v868
        %v965 = vunpack.c.l.b16 %v869
        %v966 = vunpack.c.l.b16 %v870
        %v967 = vunpack.c.l.b16 %v871
        %v968 = vunpack.c.l.b16 %v872
        %v969 = vunpack.c.l.b16 %v873
        %v970 = vunpack.c.l.b16 %v874
        %v971 = vunpack.c.l.b16 %v875
        %v972 = vunpack.c.l.b16 %v876
        %v973 = vunpack.c.l.b16 %v877
        %v974 = vunpack.c.l.b16 %v878
        %v975 = vunpack.c.l.b16 %v879
        %v976 = vunpack.c.l.b16 %v880
        %v977 = vunpack.c.l.b16 %v881
        %v978 = vunpack.c.l.b16 %v882
        %v979 = vunpack.c.l.b16 %v883
        %v980 = vunpack.c.l.b16 %v884
        %v981 = vunpack.c.l.b16 %v885
        %v982 = vunpack.c.l.b16 %v886
        %v983 = vunpack.c.l.b16 %v887
        %v984 = vunpack.c.l.b16 %v888
        %v985 = vunpack.c.l.b16 %v889
        %v986 = vunpack.c.l.b16 %v890
        %v987 = vunpack.c.l.b16 %v891
        %v988 = vunpack.c.l.b16 %v892
        %v989 = vunpack.c.l.b16 %v893
        %v990 = vpack.c.b16 %v943, %v942
        %v991 = vpack.c.b16 %v945, %v944
        %v992 = vpack.c.b16 %v947, %v946
        %v993 = vpack.c.b16 %v949, %v948
        %v994 = vpack.c.b16 %v951, %v950
        %v995 = vpack.c.b16 %v953, %v952
        %v996 = vpack.c.b16 %v955, %v954
        %v997 = vpack.c.b16 %v957, %v956
        %v998 = vpack.c.b16 %v959, %v958
        %v999 = vpack.c.b16 %v961, %v960
        %v1000 = vpack.c.b16 %v963, %v962
        %v1001 = vpack.c.b16 %v965, %v964
        %v1002 = vpack.c.b16 %v967, %v966
        %v1003 = vpack.c.b16 %v969, %v968
        %v1004 = vpack.c.b16 %v971, %v970
        %v1005 = vpack.c.b16 %v973, %v972
        %v1006 = vpack.c.b16 %v975, %v974
        %v1007 = vpack.c.b16 %v977, %v976
        %v1008 = vpack.c.b16 %v979, %v978
        %v1009 = vpack.c.b16 %v981, %v980
        %v1010 = vpack.c.b16 %v983, %v982
        %v1011 = vpack.c.b16 %v985, %v984
        %v1012 = vpack.c.b16 %v987, %v986
        %v1013 = vpack.c.b16 %v989, %v988
        %1038 = vmatprep.subr.bf16.mxu0 0
        %1039 = vmatpush1.bf16.msra.mxu0 %v990
        %1040 = vmatprep.subr.bf16.mxu0 0
        %1041 = vmatpush1.bf16.msra.mxu0 %v991
        %1042 = vmatprep.subr.bf16.mxu0 0
        %1043 = vmatpush1.bf16.msra.mxu0 %v992
        %1044 = vmatprep.subr.bf16.mxu0 0
        %1045 = vmatpush1.bf16.msra.mxu0 %v993
        %1046 = vmatprep.subr.bf16.mxu0 0
        %1047 = vmatpush1.bf16.msra.mxu0 %v994
        %1048 = vmatprep.subr.bf16.mxu0 0
        %1049 = vmatpush1.bf16.msra.mxu0 %v995
        %1050 = vmatprep.subr.bf16.mxu0 0
        %1051 = vmatpush1.bf16.msra.mxu0 %v996
        %1052 = vmatprep.subr.bf16.mxu0 0
        %1053 = vmatpush1.bf16.msra.mxu0 %v997
        %1054 = vmatprep.subr.bf16.mxu0 0
        %1055 = vmatpush1.bf16.msra.mxu0 %v998
        %1056 = vmatprep.subr.bf16.mxu0 0
        %1057 = vmatpush1.bf16.msra.mxu0 %v999
        %1058 = vmatprep.subr.bf16.mxu0 0
        %1059 = vmatpush1.bf16.msra.mxu0 %v1000
        %1060 = vmatprep.subr.bf16.mxu0 0
        %1061 = vmatpush1.bf16.msra.mxu0 %v1001
        %1062 = vmatprep.subr.bf16.mxu0 0
        %1063 = vmatpush1.bf16.msra.mxu0 %v1002
        %1064 = vmatprep.subr.bf16.mxu0 0
        %1065 = vmatpush1.bf16.msra.mxu0 %v1003
        %1066 = vmatprep.subr.bf16.mxu0 0
        %1067 = vmatpush1.bf16.msra.mxu0 %v1004
        %1068 = vmatprep.subr.bf16.mxu0 0
        %1069 = vmatpush1.bf16.msra.mxu0 %v1005
        %1070 = vmatprep.mubr.bf16.mxu0 %v842
        %1071 = vmatmul.mubr.bf16.gmra.mrb[0].mxu0 %v840
        %v1072 = vpop.f32.mrb[0].mxu0
        %v1073 = vadd.f32 0.0, %v1072
        %v1074 = vpop.f32.mrb[0].mxu0
        %v1075 = vpop.f32.mrb[0].mxu0
        %v1076 = vadd.f32 0.0, %v1075
        %v1077 = vpop.f32.mrb[0].mxu0
        %1078 = vmatprep.mubr.bf16.mxu0 %v843
        %1079 = vmatmul.mubr.bf16.gmra.mrb[0].mxu0 %v841
        %v1080 = vpop.f32.mrb[0].mxu0
        %v1081 = vadd.f32 0.0, %v1080
        %v1082 = vpop.f32.mrb[0].mxu0
        %v1083 = vpop.f32.mrb[0].mxu0
        %v1084 = vadd.f32 0.0, %v1083
        %v1085 = vpop.f32.mrb[0].mxu0
        %1086 = vdwg.mxu0
        %1087 = vmatprep.subr.bf16.mxu0 0
        %1088 = vmatpush1.bf16.msra.mxu0 %v1006
        %1089 = vmatprep.subr.bf16.mxu0 0
        %1090 = vmatpush1.bf16.msra.mxu0 %v1007
        %1091 = vmatprep.subr.bf16.mxu0 0
        %1092 = vmatpush1.bf16.msra.mxu0 %v1008
        %1093 = vmatprep.subr.bf16.mxu0 0
        %1094 = vmatpush1.bf16.msra.mxu0 %v1009
        %1095 = vmatprep.subr.bf16.mxu0 0
        %1096 = vmatpush1.bf16.msra.mxu0 %v1010
        %1097 = vmatprep.subr.bf16.mxu0 0
        %1098 = vmatpush1.bf16.msra.mxu0 %v1011
        %1099 = vmatprep.subr.bf16.mxu0 0
        %1100 = vmatpush1.bf16.msra.mxu0 %v1012
        %1101 = vmatprep.subr.bf16.mxu0 0
        %1102 = vmatpush1.bf16.msra.mxu0 %v1013
        %1103 = vmatprep.subr.bf16.mxu0 0
        %1104 = vmatpush1.bf16.msra.mxu0 0
        %1105 = vmatprep.subr.bf16.mxu0 0
        %1106 = vmatpush1.bf16.msra.mxu0 0
        %1107 = vmatprep.subr.bf16.mxu0 0
        %1108 = vmatpush1.bf16.msra.mxu0 0
        %1109 = vmatprep.subr.bf16.mxu0 0
        %1110 = vmatpush1.bf16.msra.mxu0 0
        %1111 = vmatprep.subr.bf16.mxu0 0
        %1112 = vmatpush1.bf16.msra.mxu0 0
        %1113 = vmatprep.subr.bf16.mxu0 0
        %1114 = vmatpush1.bf16.msra.mxu0 0
        %1115 = vmatprep.subr.bf16.mxu0 0
        %1116 = vmatpush1.bf16.msra.mxu0 0
        %1117 = vmatprep.subr.bf16.mxu0 0
        %1118 = vmatpush1.bf16.msra.mxu0 0
        %1119 = vmatprep.mubr.bf16.mxu0 0
        %1120 = vmatmul.mubr.bf16.gmra.mrb[0].mxu0 %v844
        %v1121 = vpop.f32.mrb[0].mxu0
        %v1122 = vadd.f32 %v1073, %v1121
        %v1123 = vpop.f32.mrb[0].mxu0
        %v1124 = vpop.f32.mrb[0].mxu0
        %v1125 = vadd.f32 %v1076, %v1124
        %v1126 = vpop.f32.mrb[0].mxu0
        %1127 = vmatprep.mubr.bf16.mxu0 0
        %1128 = vmatmul.mubr.bf16.gmra.mrb[0].mxu0 %v845
        %v1129 = vpop.f32.mrb[0].mxu0
        %v1130 = vadd.f32 %v1081, %v1129
        %v1131 = vpop.f32.mrb[0].mxu0
        %v1132 = vpop.f32.mrb[0].mxu0
        %v1133 = vadd.f32 %v1084, %v1132
        %v1134 = vpop.f32.mrb[0].mxu0
        %1135 = vdwg.mxu0
        %v1136 = vadd.f32 %v1122, %v1125
        %v1137 = vrot.slane %v1136, 4
        %v1138 = vadd.f32 %v1136, %v1137
        %v1139 = vrot.slane %v1138, 2
        %v1140 = vadd.f32 %v1138, %v1139
        %v1141 = vrot.slane %v1140, 1
        %v1142 = vadd.f32 %v1140, %v1141
        %v1143 = vadd.f32 %v1130, %v1133
        %v1144 = vrot.slane %v1143, 4
        %v1145 = vadd.f32 %v1143, %v1144
        %v1146 = vrot.slane %v1145, 2
        %v1147 = vadd.f32 %v1145, %v1146
        %v1148 = vrot.slane %v1147, 1
        %v1149 = vadd.f32 %v1147, %v1148
        %v1150 = vrcp.pop 16.0
        %v1151 = vmul.f32 %v1142, %v1150
        %v1152 = vmul.f32 %v1149, %v1150
        %v1153 = vld [vmem:[%s7] sm:$0xff]
        %v1154 = vld [vmem:[%s7 + $0x8] sm:$0xff]
        %v1155 = vld [vmem:[%s7 + $0x10] sm:$0xff]
        %v1156 = vld [vmem:[%s7 + $0x18] sm:$0xff]
        %v1157 = vld [vmem:[%s7 + $0x20] sm:$0xff]
        %v1158 = vld [vmem:[%s7 + $0x28] sm:$0xff]
        %v1159 = vld [vmem:[%s7 + $0x30] sm:$0xff]
        %v1160 = vld [vmem:[%s7 + $0x38] sm:$0xff]
        %v1161 = vld [vmem:[%s7 + $0x40] sm:$0xff]
        %v1162 = vld [vmem:[%s7 + $0x48] sm:$0xff]
        %v1163 = vld [vmem:[%s7 + $0x50] sm:$0xff]
        %v1164 = vld [vmem:[%s7 + $0x58] sm:$0xff]
        %v1165 = vld [vmem:[%s7 + $0x60] sm:$0xff]
        %v1166 = vld [vmem:[%s7 + $0x68] sm:$0xff]
        %v1167 = vld [vmem:[%s7 + $0x70] sm:$0xff]
        %v1168 = vld [vmem:[%s7 + $0x78] sm:$0xff]
        %v1169 = vld [vmem:[%s8] sm:$0x1]
        %v1171 = vlaneseq
        %v1172 = vshrl.u32 %v1171, 7
        %v1173 = vsub.s32 0, %v1172
        %v1174 = vrot.slane %v1169, %v1173
        %vm1178 = vcmask 1041409
        %v1179 = vsel %vm1178, %v1152, %v1151
        %1181 = vmatprep.subr.mxu0 0.0
        %1182 = vmatpush1.msra.mxu0 %v1153
        %1183 = vmatprep.subr.mxu0 0.0
        %1184 = vmatpush1.msra.mxu0 %v1154
        %1185 = vmatprep.subr.mxu0 0.0
        %1186 = vmatpush1.msra.mxu0 %v1155
        %1187 = vmatprep.subr.mxu0 0.0
        %1188 = vmatpush1.msra.mxu0 %v1156
        %1189 = vmatprep.subr.mxu0 0.0
        %1190 = vmatpush1.msra.mxu0 %v1157
        %1191 = vmatprep.subr.mxu0 0.0
        %1192 = vmatpush1.msra.mxu0 %v1158
        %1193 = vmatprep.subr.mxu0 0.0
        %1194 = vmatpush1.msra.mxu0 %v1159
        %1195 = vmatprep.subr.mxu0 0.0
        %1196 = vmatpush1.msra.mxu0 %v1160
        %1197 = vmatprep.subr.mxu0 0.0
        %1198 = vmatpush1.msra.mxu0 %v1161
        %1199 = vmatprep.subr.mxu0 0.0
        %1200 = vmatpush1.msra.mxu0 %v1162
        %1201 = vmatprep.subr.mxu0 0.0
        %1202 = vmatpush1.msra.mxu0 %v1163
        %1203 = vmatprep.subr.mxu0 0.0
        %1204 = vmatpush1.msra.mxu0 %v1164
        %1205 = vmatprep.subr.mxu0 0.0
        %1206 = vmatpush1.msra.mxu0 %v1165
        %1207 = vmatprep.subr.mxu0 0.0
        %1208 = vmatpush1.msra.mxu0 %v1166
        %1209 = vmatprep.subr.mxu0 0.0
        %1210 = vmatpush1.msra.mxu0 %v1167
        %1211 = vmatprep.subr.mxu0 0.0
        %1212 = vmatpush1.msra.mxu0 %v1168
        %1213 = vmatprep.subr.mxu0 0.0
        %1214 = vmatpush1.msra.mxu0 0.0
        %1215 = vmatprep.subr.mxu0 0.0
        %1216 = vmatpush1.msra.mxu0 0.0
        %1217 = vmatprep.subr.mxu0 0.0
        %1218 = vmatpush1.msra.mxu0 0.0
        %1219 = vmatprep.subr.mxu0 0.0
        %1220 = vmatpush1.msra.mxu0 0.0
        %1221 = vmatprep.subr.mxu0 0.0
        %1222 = vmatpush1.msra.mxu0 0.0
        %1223 = vmatprep.subr.mxu0 0.0
        %1224 = vmatpush1.msra.mxu0 0.0
        %1225 = vmatprep.subr.mxu0 0.0
        %1226 = vmatpush1.msra.mxu0 0.0
        %1227 = vmatprep.subr.mxu0 0.0
        %1228 = vmatpush1.msra.mxu0 0.0
        %1229 = vmatprep.subr.mxu0 0.0
        %1230 = vmatpush1.msra.mxu0 0.0
        %1231 = vmatprep.subr.mxu0 0.0
        %1232 = vmatpush1.msra.mxu0 0.0
        %1233 = vmatprep.subr.mxu0 0.0
        %1234 = vmatpush1.msra.mxu0 0.0
        %1235 = vmatprep.subr.mxu0 0.0
        %1236 = vmatpush1.msra.mxu0 0.0
        %1237 = vmatprep.subr.mxu0 0.0
        %1238 = vmatpush1.msra.mxu0 0.0
        %1239 = vmatprep.subr.mxu0 0.0
        %1240 = vmatpush1.msra.mxu0 0.0
        %1241 = vmatprep.subr.mxu0 0.0
        %1242 = vmatpush1.msra.mxu0 0.0
        %1243 = vmatprep.subr.mxu0 0.0
        %1244 = vmatpush1.msra.mxu0 0.0
        %1245 = vmatprep.mubr.f32.mxu0 0.0
        %1246 = vmatmul.mubr.f32.gmra.mrb[0].mxu0 %v1179
        %v1247 = vpop.f32.mrb[0].mxu0
        %v1248 = vadd.f32 %v1174, %v1247
        %v1249 = vpop.f32.mrb[0].mxu0
        %1250 = vdwg.mxu0
        %v1251 = vmax.f32 %v1248, 0.0
        %v1252 = vld [vmem:[%s9] sm:$0x3]
        %v1253 = vld [vmem:[%s10] sm:$0x1]
        %v1255 = vlaneseq
        %v1256 = vshrl.u32 %v1255, 7
        %v1257 = vsub.s32 0, %v1256
        %v1258 = vrot.slane %v1253, %v1257
        %vm1260 = vcmask 15360
        %v1262 = vsel %vm1260, %v1251, 0
        %vm1264 = vcmask 1041408
        %v1266 = vsel %vm1264, %v1252, 0
        %1268 = vmatprep.subr.mxu0 0.0
        %1269 = vmatpush1.msra.mxu0 %v1266
        %1270 = vmatprep.subr.mxu0 0.0
        %1271 = vmatpush1.msra.mxu0 0.0
        %1272 = vmatprep.subr.mxu0 0.0
        %1273 = vmatpush1.msra.mxu0 0.0
        %1274 = vmatprep.subr.mxu0 0.0
        %1275 = vmatpush1.msra.mxu0 0.0
        %1276 = vmatprep.subr.mxu0 0.0
        %1277 = vmatpush1.msra.mxu0 0.0
        %1278 = vmatprep.subr.mxu0 0.0
        %1279 = vmatpush1.msra.mxu0 0.0
        %1280 = vmatprep.subr.mxu0 0.0
        %1281 = vmatpush1.msra.mxu0 0.0
        %1282 = vmatprep.subr.mxu0 0.0
        %1283 = vmatpush1.msra.mxu0 0.0
        %1284 = vmatprep.subr.mxu0 0.0
        %1285 = vmatpush1.msra.mxu0 0.0
        %1286 = vmatprep.subr.mxu0 0.0
        %1287 = vmatpush1.msra.mxu0 0.0
        %1288 = vmatprep.subr.mxu0 0.0
        %1289 = vmatpush1.msra.mxu0 0.0
        %1290 = vmatprep.subr.mxu0 0.0
        %1291 = vmatpush1.msra.mxu0 0.0
        %1292 = vmatprep.subr.mxu0 0.0
        %1293 = vmatpush1.msra.mxu0 0.0
        %1294 = vmatprep.subr.mxu0 0.0
        %1295 = vmatpush1.msra.mxu0 0.0
        %1296 = vmatprep.subr.mxu0 0.0
        %1297 = vmatpush1.msra.mxu0 0.0
        %1298 = vmatprep.subr.mxu0 0.0
        %1299 = vmatpush1.msra.mxu0 0.0
        %1300 = vmatprep.subr.mxu0 0.0
        %1301 = vmatpush1.msra.mxu0 0.0
        %1302 = vmatprep.subr.mxu0 0.0
        %1303 = vmatpush1.msra.mxu0 0.0
        %1304 = vmatprep.subr.mxu0 0.0
        %1305 = vmatpush1.msra.mxu0 0.0
        %1306 = vmatprep.subr.mxu0 0.0
        %1307 = vmatpush1.msra.mxu0 0.0
        %1308 = vmatprep.subr.mxu0 0.0
        %1309 = vmatpush1.msra.mxu0 0.0
        %1310 = vmatprep.subr.mxu0 0.0
        %1311 = vmatpush1.msra.mxu0 0.0
        %1312 = vmatprep.subr.mxu0 0.0
        %1313 = vmatpush1.msra.mxu0 0.0
        %1314 = vmatprep.subr.mxu0 0.0
        %1315 = vmatpush1.msra.mxu0 0.0
        %1316 = vmatprep.subr.mxu0 0.0
        %1317 = vmatpush1.msra.mxu0 0.0
        %1318 = vmatprep.subr.mxu0 0.0
        %1319 = vmatpush1.msra.mxu0 0.0
        %1320 = vmatprep.subr.mxu0 0.0
        %1321 = vmatpush1.msra.mxu0 0.0
        %1322 = vmatprep.subr.mxu0 0.0
        %1323 = vmatpush1.msra.mxu0 0.0
        %1324 = vmatprep.subr.mxu0 0.0
        %1325 = vmatpush1.msra.mxu0 0.0
        %1326 = vmatprep.subr.mxu0 0.0
        %1327 = vmatpush1.msra.mxu0 0.0
        %1328 = vmatprep.subr.mxu0 0.0
        %1329 = vmatpush1.msra.mxu0 0.0
        %1330 = vmatprep.subr.mxu0 0.0
        %1331 = vmatpush1.msra.mxu0 0.0
        %1332 = vmatprep.mubr.f32.mxu0 0.0
        %1333 = vmatmul.mubr.f32.gmra.mrb[0].mxu0 %v1262
        %v1334 = vpop.f32.mrb[0].mxu0
        %v1335 = vadd.f32 %v1258, %v1334
        %v1336 = vpop.f32.mrb[0].mxu0
        %1337 = vdwg.mxu0
        %v1338 = vsub.f32 0.0, %v1335
        %v1339 = vmul.f32 %v1338, 1.442695
        %v1340 = vpow.pop %v1339
        %v1341 = vadd.f32 %v1340, 1.0
        %v1342 = vrcp.pop %v1341
        %v1343 = vmul.f32 1.0, %v1342
        %v1346 = vunpack.c.l.s4 1966171168
        %v1347 = vunpack.c.0.s8 %v1346
        %v1348 = vlaneseq
        %v1349 = vshrl.u32 %v1348, 7
        %v1350 = vsub.s32 %v1347, %v1349
        %v1351 = vrot.slane %v1343, %v1350
        %v1352 = vcombine.high %v1351, %v1351
        %v1354 = vunpack.c.l.s4 1966171168
        %v1355 = vunpack.c.0.s8 %v1354
        %v1356 = vlaneseq
        %v1357 = vshrl.u32 %v1356, 7
        %v1358 = vsub.s32 %v1355, %v1357
        %v1359 = vrot.slane %v1351, %v1358
        %v1361 = vunpack.c.l.s4 1966171168
        %v1362 = vunpack.c.0.s8 %v1361
        %v1363 = vlaneseq
        %v1364 = vshrl.u32 %v1363, 7
        %v1365 = vsub.s32 %v1362, %v1364
        %v1366 = vrot.slane %v1352, %v1365
        %v1367 = vlaneseq
        %v1368 = vshrl.u32 %v1367, 7
        %v1369 = vsub.s32 0, %v1368
        %v1370 = vrot.slane %v1359, %v1369
        %v1371 = vlaneseq
        %v1372 = vshrl.u32 %v1371, 7
        %v1373 = vsub.s32 0, %v1372
        %v1374 = vrot.slane %v1366, %v1373
        %v1377 = vmul.f32 %v1122, %v1370
        %v1378 = vmul.f32 %v1125, %v1370
        %v1379 = vmul.f32 %v1130, %v1374
        %v1380 = vmul.f32 %v1133, %v1374
        %v1381 = vadd.f32 %v1377, %v428
        %v1382 = vadd.f32 %v1378, %v429
        %v1383 = vadd.f32 %v1379, %v430
        %v1384 = vadd.f32 %v1380, %v431
        %v1385 = vpack.c.bf16 %v1382, %v1381
        %v1386 = vpack.c.bf16 %v1384, %v1383
        %v1389 = vunpack.c.l.b16 %v1385
        %v1390 = vunpack.c.h.b16 %v1385
        %v1391 = vunpack.c.l.b16 %v1386
        %v1392 = vunpack.c.h.b16 %v1386
        %v1393 = vpack.c.b16 %v1389, %v1389
        %v1394 = vpack.c.b16 %v1390, %v1390
        %v1395 = vpack.c.b16 %v1391, %v1391
        %v1396 = vpack.c.b16 %v1392, %v1392
        %1401 = vst [vmem:[%s410] sm:$0xf] %v1393
        %1402 = vst [vmem:[%s410 + $0x4] sm:$0xf] %v1394
        %1403 = vst [vmem:[%s410 + $0x8] sm:$0xf] %v1395
        %1404 = vst [vmem:[%s410 + $0xc] sm:$0xf] %v1396
        %s1405 = sand.u32 %s271, 1
        %s1406 = scalar_lea.sflag [#allocation4], %s1405
        %s1407 = sand.u32 %s271, 1
        %s1408 = smul.addr %s1407, 16
        %s1409 = scalar_lea.vmem [#allocation7], %s1408
        // Predicated region
        $region73: #{tpu_custom_call.1} parent=63 // pred_check
          %p1410 = pneg %p281
        $region74: #{tpu_custom_call.1} parent=63 // pred_check_branch
          %1412 = sbr.rel (%p1410) target = $region76
        $region75: #{tpu_custom_call.1} parent=63 // pred_region
          %s1413 = smul.u32 2, %s27
          %s1415 = ssub.s32 256, 256
          %1416 = vsyncadd %s1406, %s1415
          %s1417 = smul.addr %s1413, 2
          %s1418 = smul.addr %s1417, 64
          %s1419 = scalar_lea.hbm %s11, %s1418
          %s1420 = sshll.u32 %s1409, 4
          %s1421 = int_to_ptr.vmem [resolvable:$true] %s1420
          %1426 = dma.vmem_to_hbm [thread:$0]  %s1421, 256, %s1419, %s1406, 64, 64, 4
        $region76: #{tpu_custom_call.1} parent=63 // pred_fallthru
          _
      $region64: #{tpu_custom_call.1} parent=5 // pred_fallthru
        _
      %p1427 = scmp.le.s32.totalorder 2, %s22
      // Predicated region
      $region77: #{tpu_custom_call.1} parent=5 // pred_check
        %p1428 = pneg %p1427
      $region78: #{tpu_custom_call.1} parent=5 // pred_check_branch
        %1430 = sbr.rel (%p1428) target = $region80
      $region79: #{tpu_custom_call.1} parent=5 // pred_region
        %s1431 = ssub.s32 %s22, 2
        // Predicated region
        $region81: #{tpu_custom_call.1} parent=79 // pred_check
          %p1432 = pneg %p287
        $region82: #{tpu_custom_call.1} parent=79 // pred_check_branch
          %1434 = sbr.rel (%p1432) target = $region84
        $region83: #{tpu_custom_call.1} parent=79 // pred_region
          %s1435 = sand.u32 %s272, 1
          %s1436 = scalar_lea.sflag [#allocation4], %s1435
          %s1437 = sand.u32 %s272, 1
          %s1438 = smul.addr %s1437, 16
          %s1439 = scalar_lea.vmem [#allocation7], %s1438
          %1440 = dma.done %s1436, 256
        $region84: #{tpu_custom_call.1} parent=79 // pred_fallthru
          _
      $region80: #{tpu_custom_call.1} parent=5 // pred_fallthru
        _
    $region6: #{tpu_custom_call.1} parent=1 // loop_footer
      %s26 = sadd.s32 1, %s22
    $region7: #{tpu_custom_call.1} parent=1 // loop_footer_branch
      %21 = sbr.rel target = $region3
    $region8: #{tpu_custom_call.1} parent=1 // loop_exit
      _
    %1441 = vsyncpa [#allocation3], 1
    %s1442 = scalar_lea.sflag [#allocation3], 1
    %1443 = vsyncpa %s1442, 1
    %1444 = vsyncpa [#allocation6], 1
    %1445 = vsyncpa [#allocation4], 1
    %s1446 = scalar_lea.sflag [#allocation4], 1
    %1447 = vsyncpa %s1446, 1

</llo_original>
